<compile_context>
chip_gen: v7x
topology: tpu7x:2x2x1
jax: 0.10.0
libtpu: 0.0.40
codegen_flags: <defaults>
</compile_context>

<pallas_src>
import functools

import jax
import jax.numpy as jnp
from jax.experimental import pallas as pl
from jax.experimental.pallas import tpu as pltpu


def _self_attention_kernel(q_ref, k_ref, v_ref, mask_ref,
                           wq_ref, wk_ref, wv_ref, wo_ref, b_ref,
                           out_ref, heads_scratch,
                           *, nb, heads, head_dim, q_len, k_len, scale):
    """One batch block (nb batch elements): fused head projections, masked softmax
    attention over all heads, one fc_out matmul, lane-dense output stores."""
    f32 = jnp.float32
    bf16 = jnp.bfloat16
    E = heads * head_dim

    # --- fused per-head projections: one (nb*len, E) @ (E, E) matmul each ----------
    # wq/wk/wv arrive as block-diagonal (E, E) bf16 weights (W.T on the diagonal),
    # so this equals `x.reshape(rows, heads, hd) @ W.T` for every head.  Activations
    # are cast to bf16 only at the MXU boundary (no-op if they already arrive bf16).
    q = jnp.dot(q_ref[...].astype(bf16), wq_ref[...], preferred_element_type=f32)
    k = jnp.dot(k_ref[...].astype(bf16), wk_ref[...], preferred_element_type=f32)
    v = jnp.dot(v_ref[...].astype(bf16), wv_ref[...], preferred_element_type=f32)

    # Fold 1/sqrt(embed_size) into q once (masked entries get -1e20 instead of
    # -1e20/sqrt(E) — identical after exp, so this matches the reference).
    q = q * f32(scale)

    # Mask: (nb, q_len, k_len), 0 => masked; hoisted out of the head loop.
    masked = mask_ref[...].astype(jnp.int32) == 0

    # --- per-head masked softmax attention, batched over the nb batch elements -----
    for h in range(heads):
        cols = slice(h * head_dim, (h + 1) * head_dim)
        qh = q[:, cols].astype(bf16).reshape(nb, q_len, head_dim)
        kh = k[:, cols].astype(bf16).reshape(nb, k_len, head_dim)
        vh = v[:, cols].astype(bf16).reshape(nb, k_len, head_dim)

        # energy = qh @ kh^T, transpose-free batched contraction on the MXU.
        s = jnp.einsum("bqd,bkd->bqk", qh, kh, preferred_element_type=f32)
        s = jnp.where(masked, f32(-1e20), s)          # masked_fill(mask == 0, -1e20)

        # Numerically-stable softmax over keys; statistics kept in f32.
        m = jnp.max(s, axis=-1, keepdims=True)
        p = jnp.exp(s - m)
        l = jnp.sum(p, axis=-1, keepdims=True)
        attn = p * pl.reciprocal(l, approx=True)      # EUP reciprocal (free-ish slot)

        oh = jnp.einsum("bqk,bkd->bqd", attn.astype(bf16), vh,
                        preferred_element_type=f32)   # (nb, q_len, hd)

        # Write this head's result straight into its lane-columns of the scratch —
        # no per-head list, no jnp.concatenate relayout, lower vreg pressure.
        heads_scratch[:, cols] = oh.reshape(nb * q_len, head_dim)

    # --- fc_out: ONE (rows, E) @ (E, E) matmul from the scratch, bias fused ---------
    y = (jnp.dot(heads_scratch[...].astype(bf16), wo_ref[...],
                 preferred_element_type=f32)
         + b_ref[...])                                # (nb*q_len, E), bias folded in
    y = y.reshape(nb, q_len, E)                       # split leading dim: layout no-op

    # Lane-dense output store: out_ref is (nb, q_len*E) (>=128 lanes wide); write
    # each query's E-wide slice into its lane offset (static slices, single pass).
    for qi in range(q_len):
        out_ref[:, qi * E:(qi + 1) * E] = y[:, qi, :]


def _num_batch_blocks(n_batch: int) -> int:
    """2 on v7x (2 TensorCores/chip) when the batch splits evenly, else 1.
    On v5e/v6e the grid is a purely serial loop, so one big block is best."""
    if n_batch >= 2 and n_batch % 2 == 0:
        try:
            kind = jax.devices()[0].device_kind.lower()
        except Exception:
            kind = ""
        if "v7" in kind or "7x" in kind:
            return 2
    return 1


def self_attention_pallas(keys_in, values_in, queries_in, mask,
                          wq, wk, wv, wo, bo, *, embed_size, heads):
    """keys_in/values_in/queries_in: (N, seq, embed_size) float32 (or bf16).
    mask: (N, query_len, key_len), 0 => masked (int8 preferred; any 0/1 dtype works).
    wq/wk/wv: (head_dim, head_dim) nn.Linear weights (out, in), no bias.
    wo: (embed_size, embed_size), bo: (embed_size,) for fc_out."""
    N, q_len, E = queries_in.shape
    k_len = keys_in.shape[1]
    v_len = values_in.shape[1]
    assert E == embed_size and embed_size % heads == 0
    assert k_len == v_len, "key_len must equal val_len"
    hd = embed_size // heads

    G = _num_batch_blocks(N)          # 1 everywhere except v7x with an even batch
    NB = N // G

    # One-time weight prep (done once at model-load time in a real pipeline):
    #  - block-diagonal fused projection weights: x @ blockdiag(W.T) applies the
    #    shared per-head Linear to every head with a single E-contraction matmul,
    #  - bf16 weights halve weight DMA and hit the MXU bf16 rate.
    eye_h = jnp.eye(heads, dtype=jnp.float32)
    wq_f = jnp.kron(eye_h, wq.T).astype(jnp.bfloat16)   # (E, E) block-diagonal
    wk_f = jnp.kron(eye_h, wk.T).astype(jnp.bfloat16)
    wv_f = jnp.kron(eye_h, wv.T).astype(jnp.bfloat16)
    wo_t = wo.T.astype(jnp.bfloat16)                    # (E, E)
    bo_row = bo.reshape(1, E).astype(jnp.float32)

    mask_i8 = mask if mask.dtype == jnp.int8 else mask.astype(jnp.int8)

    # Free (contiguous) reshapes: feed activations as (N*seq, E) so a whole batch
    # block projects in one MXU matmul; no head split / transpose copies.
    q2 = queries_in.reshape(N * q_len, E)
    k2 = keys_in.reshape(N * k_len, E)
    v2 = values_in.reshape(N * v_len, E)

    kernel = functools.partial(
        _self_attention_kernel, nb=NB, heads=heads, head_dim=hd,
        q_len=q_len, k_len=k_len, scale=1.0 / float(embed_size) ** 0.5)

    out_flat = pl.pallas_call(
        kernel,
        # Lane-dense output slab: last dim q_len*E; reshaped back below (free).
        out_shape=jax.ShapeDtypeStruct((G, NB, q_len * E), jnp.float32),
        grid_spec=pltpu.PrefetchScalarGridSpec(
            num_scalar_prefetch=0,
            grid=(G,),                      # 1 whole-batch block, or 2 half-batch blocks (v7x)
            in_specs=[
                pl.BlockSpec((NB * q_len, E), lambda i: (i, 0)),
                pl.BlockSpec((NB * k_len, E), lambda i: (i, 0)),
                pl.BlockSpec((NB * v_len, E), lambda i: (i, 0)),
                pl.BlockSpec((NB, q_len, k_len), lambda i: (i, 0, 0)),
                pl.BlockSpec((E, E), lambda i: (0, 0)),
                pl.BlockSpec((E, E), lambda i: (0, 0)),
                pl.BlockSpec((E, E), lambda i: (0, 0)),
                pl.BlockSpec((E, E), lambda i: (0, 0)),
                pl.BlockSpec((1, E), lambda i: (0, 0)),
            ],
            out_specs=pl.BlockSpec((None, NB, q_len * E), lambda i: (i, 0, 0)),
            scratch_shapes=[pltpu.VMEM((NB * q_len, E), jnp.float32)],
        ),
        compiler_params=pltpu.CompilerParams(
            dimension_semantics=("parallel",)),   # only meaningful on v7x (2 TCs)
    )(q2, k2, v2, mask_i8, wq_f, wk_f, wv_f, wo_t, bo_row)

    return out_flat.reshape(N, q_len, E)          # contiguous reshape, no copy


def self_attention_ref(keys_in, values_in, queries_in, mask,
                       wq, wk, wv, wo, bo, *, embed_size, heads):
    """Pure-JAX f32 reference mirroring the PyTorch forward exactly."""
    N, q_len, E = queries_in.shape
    k_len, v_len = keys_in.shape[1], values_in.shape[1]
    hd = embed_size // heads
    v = values_in.reshape(N, v_len, heads, hd) @ wv.T
    k = keys_in.reshape(N, k_len, heads, hd) @ wk.T
    q = queries_in.reshape(N, q_len, heads, hd) @ wq.T
    energy = jnp.einsum("nqhd,nkhd->nhqk", q, k)
    energy = jnp.where(mask[:, None, :, :] == 0, jnp.float32(-1e20), energy)
    attn = jax.nn.softmax(energy / jnp.sqrt(jnp.float32(embed_size)), axis=3)
    out = jnp.einsum("nhql,nlhd->nqhd", attn, v).reshape(N, q_len, heads * hd)
    return out @ wo.T + bo


if __name__ == "__main__":
    N = 2          # batch
    seq = 8        # query_len = key_len = val_len
    embed_size = 32
    heads = 4
    head_dim = embed_size // heads

    key = jax.random.PRNGKey(0)
    kq, kk, kv, kwq, kwk, kwv, kwo, kbo = jax.random.split(key, 8)

    queries = jax.random.normal(kq, (N, seq, embed_size), dtype=jnp.float32)
    keys_in = jax.random.normal(kk, (N, seq, embed_size), dtype=jnp.float32)
    values = jax.random.normal(kv, (N, seq, embed_size), dtype=jnp.float32)

    # Deterministic parameters (nn.Linear weight layout: (out_features, in_features)).
    wq = jax.random.normal(kwq, (head_dim, head_dim), dtype=jnp.float32) * 0.1
    wk = jax.random.normal(kwk, (head_dim, head_dim), dtype=jnp.float32) * 0.1
    wv = jax.random.normal(kwv, (head_dim, head_dim), dtype=jnp.float32) * 0.1
    wo = jax.random.normal(kwo, (embed_size, embed_size), dtype=jnp.float32) * 0.1
    bo = jax.random.normal(kbo, (embed_size,), dtype=jnp.float32) * 0.1

    # Causal mask (broadcast over heads), 0 => masked.  Shipped as int8.
    mask = jnp.tril(jnp.ones((seq, seq), dtype=jnp.int8))
    mask = jnp.broadcast_to(mask, (N, seq, seq))

    out = self_attention_pallas(keys_in, values, queries, mask,
                                wq, wk, wv, wo, bo,
                                embed_size=embed_size, heads=heads)
    out = jax.block_until_ready(out)

    ref = self_attention_ref(keys_in, values, queries, mask,
                             wq, wk, wv, wo, bo,
                             embed_size=embed_size, heads=heads)
    assert out.shape == (N, seq, embed_size)
    # bf16 MXU operands + approx reciprocal => compare at bf16-level tolerance
    # (softmax statistics and accumulation stay f32).  Note: fully-masked rows give
    # a uniform distribution over masked keys, matching the -1e20 reference behavior.
    err = float(jnp.max(jnp.abs(out - ref)))
    assert jnp.allclose(out, ref, rtol=2e-2, atol=2e-2), f"mismatch vs reference (max abs err {err})"

    print("KERNEL_OK")
</pallas_src>

<mosaic_0001>
module attributes {stable_mosaic.version = 11 : i64} {
  func.func @_self_attention_kernel(%arg0: i32, %arg1: memref<16x32xf32, #tpu.memory_space<vmem>>, %arg2: memref<16x32xf32, #tpu.memory_space<vmem>>, %arg3: memref<16x32xf32, #tpu.memory_space<vmem>>, %arg4: memref<2x8x8xi8, #tpu.memory_space<vmem>>, %arg5: memref<32x32xbf16, #tpu.memory_space<vmem>>, %arg6: memref<32x32xbf16, #tpu.memory_space<vmem>>, %arg7: memref<32x32xbf16, #tpu.memory_space<vmem>>, %arg8: memref<32x32xbf16, #tpu.memory_space<vmem>>, %arg9: memref<1x32xf32, #tpu.memory_space<vmem>>, %arg10: memref<1x2x256xf32, #tpu.memory_space<vmem>>, %arg11: memref<16x32xf32, #tpu.memory_space<vmem>>) attributes {dimension_semantics = [#tpu.dimension_semantics<parallel>], iteration_bounds = array<i64: 1>, scalar_prefetch = 0 : i64, scratch_operands = 1 : i64, tpu.core_type = #tpu.core_type<tc>, window_params = [{transform_indices = @transform_0, window_bounds = array<i64: 16, 32>}, {transform_indices = @transform_1, window_bounds = array<i64: 16, 32>}, {transform_indices = @transform_2, window_bounds = array<i64: 16, 32>}, {transform_indices = @transform_3, window_bounds = array<i64: 2, 8, 8>}, {pipeline_mode = #tpu.pipeline_mode<synchronous>, transform_indices = @transform_4, window_bounds = array<i64: 32, 32>}, {pipeline_mode = #tpu.pipeline_mode<synchronous>, transform_indices = @transform_5, window_bounds = array<i64: 32, 32>}, {pipeline_mode = #tpu.pipeline_mode<synchronous>, transform_indices = @transform_6, window_bounds = array<i64: 32, 32>}, {pipeline_mode = #tpu.pipeline_mode<synchronous>, transform_indices = @transform_7, window_bounds = array<i64: 32, 32>}, {pipeline_mode = #tpu.pipeline_mode<synchronous>, transform_indices = @transform_8, window_bounds = array<i64: 1, 32>}, {transform_indices = @transform_9, window_bounds = array<i64: 1, 2, 256>}]} {
    %c0 = arith.constant 0 : index
    %c0_0 = arith.constant 0 : index
    %0 = vector.load %arg1[%c0, %c0_0] : memref<16x32xf32, #tpu.memory_space<vmem>>, vector<16x32xf32>
    %1 = arith.truncf %0 : vector<16x32xf32> to vector<16x32xbf16>
    %c0_1 = arith.constant 0 : index
    %c0_2 = arith.constant 0 : index
    %2 = vector.load %arg5[%c0_1, %c0_2] : memref<32x32xbf16, #tpu.memory_space<vmem>>, vector<32x32xbf16>
    %cst = arith.constant dense<0.000000e+00> : vector<16x32xf32>
    %3 = tpu.matmul %1, %2, %cst {dimension_numbers = #tpu.dot_dimension_numbers<[1], [0], [0], [1], [0, 0, 1, 1], [], []>} : vector<16x32xbf16>, vector<32x32xbf16>, vector<16x32xf32> -> vector<16x32xf32>
    %c0_3 = arith.constant 0 : index
    %c0_4 = arith.constant 0 : index
    %4 = vector.load %arg2[%c0_3, %c0_4] : memref<16x32xf32, #tpu.memory_space<vmem>>, vector<16x32xf32>
    %5 = arith.truncf %4 : vector<16x32xf32> to vector<16x32xbf16>
    %c0_5 = arith.constant 0 : index
    %c0_6 = arith.constant 0 : index
    %6 = vector.load %arg6[%c0_5, %c0_6] : memref<32x32xbf16, #tpu.memory_space<vmem>>, vector<32x32xbf16>
    %cst_7 = arith.constant dense<0.000000e+00> : vector<16x32xf32>
    %7 = tpu.matmul %5, %6, %cst_7 {dimension_numbers = #tpu.dot_dimension_numbers<[1], [0], [0], [1], [0, 0, 1, 1], [], []>} : vector<16x32xbf16>, vector<32x32xbf16>, vector<16x32xf32> -> vector<16x32xf32>
    %c0_8 = arith.constant 0 : index
    %c0_9 = arith.constant 0 : index
    %8 = vector.load %arg3[%c0_8, %c0_9] : memref<16x32xf32, #tpu.memory_space<vmem>>, vector<16x32xf32>
    %9 = arith.truncf %8 : vector<16x32xf32> to vector<16x32xbf16>
    %c0_10 = arith.constant 0 : index
    %c0_11 = arith.constant 0 : index
    %10 = vector.load %arg7[%c0_10, %c0_11] : memref<32x32xbf16, #tpu.memory_space<vmem>>, vector<32x32xbf16>
    %cst_12 = arith.constant dense<0.000000e+00> : vector<16x32xf32>
    %11 = tpu.matmul %9, %10, %cst_12 {dimension_numbers = #tpu.dot_dimension_numbers<[1], [0], [0], [1], [0, 0, 1, 1], [], []>} : vector<16x32xbf16>, vector<32x32xbf16>, vector<16x32xf32> -> vector<16x32xf32>
    %cst_13 = arith.constant 0.176776692 : f32
    %12 = vector.broadcast %cst_13 : f32 to vector<16x32xf32>
    %13 = arith.mulf %3, %12 : vector<16x32xf32>
    %c0_14 = arith.constant 0 : index
    %c0_15 = arith.constant 0 : index
    %c0_16 = arith.constant 0 : index
    %14 = vector.load %arg4[%c0_14, %c0_15, %c0_16] : memref<2x8x8xi8, #tpu.memory_space<vmem>>, vector<2x8x8xi8>
    %15 = arith.extsi %14 : vector<2x8x8xi8> to vector<2x8x8xi32>
    %c0_i32 = arith.constant 0 : i32
    %16 = vector.broadcast %c0_i32 : i32 to vector<2x8x8xi32>
    %17 = arith.cmpi eq, %15, %16 : vector<2x8x8xi32>
    %18 = vector.extract_strided_slice %13 {offsets = [0, 0], sizes = [16, 8], strides = [1, 1]} : vector<16x32xf32> to vector<16x8xf32>
    %19 = arith.truncf %18 : vector<16x8xf32> to vector<16x8xbf16>
    %20 = vector.shape_cast %19 : vector<16x8xbf16> to vector<2x8x8xbf16>
    %21 = vector.extract_strided_slice %7 {offsets = [0, 0], sizes = [16, 8], strides = [1, 1]} : vector<16x32xf32> to vector<16x8xf32>
    %22 = arith.truncf %21 : vector<16x8xf32> to vector<16x8xbf16>
    %23 = vector.shape_cast %22 : vector<16x8xbf16> to vector<2x8x8xbf16>
    %24 = vector.extract_strided_slice %11 {offsets = [0, 0], sizes = [16, 8], strides = [1, 1]} : vector<16x32xf32> to vector<16x8xf32>
    %25 = arith.truncf %24 : vector<16x8xf32> to vector<16x8xbf16>
    %26 = vector.shape_cast %25 : vector<16x8xbf16> to vector<2x8x8xbf16>
    "tpu.trace_start"() <{level = 10 : i32, message = "bqd,bkd->bqk"}> : () -> ()
    %cst_17 = arith.constant dense<0.000000e+00> : vector<2x8x8xf32>
    %27 = tpu.matmul %20, %23, %cst_17 {dimension_numbers = #tpu.dot_dimension_numbers<[2], [2], [1], [1], [0, 0, 0, 1, 1, 1], [0], [0]>} : vector<2x8x8xbf16>, vector<2x8x8xbf16>, vector<2x8x8xf32> -> vector<2x8x8xf32>
    %cst_18 = arith.constant -1.000000e+20 : f32
    "tpu.trace_stop"() : () -> ()
    %28 = vector.broadcast %cst_18 : f32 to vector<2x8x8xf32>
    %29 = arith.select %17, %28, %27 : vector<2x8x8xi1>, vector<2x8x8xf32>
    %cst_19 = arith.constant dense<0xFF800000> : vector<2x8xf32>
    %30 = vector.multi_reduction <maximumf>, %29, %cst_19 [2] : vector<2x8x8xf32> to vector<2x8xf32>
    %31 = vector.shape_cast %30 : vector<2x8xf32> to vector<2x8x1xf32>
    %32 = vector.broadcast %31 : vector<2x8x1xf32> to vector<2x8x8xf32>
    %33 = arith.subf %29, %32 : vector<2x8x8xf32>
    %34 = math.exp %33 : vector<2x8x8xf32>
    %cst_20 = arith.constant dense<0.000000e+00> : vector<2x8xf32>
    %35 = vector.multi_reduction <add>, %34, %cst_20 [2] : vector<2x8x8xf32> to vector<2x8xf32>
    %36 = vector.shape_cast %35 : vector<2x8xf32> to vector<2x8x1xf32>
    %37 = tpu.reciprocal %36 {approx = true} : vector<2x8x1xf32> -> vector<2x8x1xf32>
    %38 = vector.broadcast %37 : vector<2x8x1xf32> to vector<2x8x8xf32>
    %39 = arith.mulf %34, %38 : vector<2x8x8xf32>
    %40 = arith.truncf %39 : vector<2x8x8xf32> to vector<2x8x8xbf16>
    "tpu.trace_start"() <{level = 10 : i32, message = "bqk,bkd->bqd"}> : () -> ()
    %cst_21 = arith.constant dense<0.000000e+00> : vector<2x8x8xf32>
    %41 = tpu.matmul %40, %26, %cst_21 {dimension_numbers = #tpu.dot_dimension_numbers<[2], [1], [1], [2], [0, 0, 0, 1, 1, 2], [0], [0]>} : vector<2x8x8xbf16>, vector<2x8x8xbf16>, vector<2x8x8xf32> -> vector<2x8x8xf32>
    "tpu.trace_stop"() : () -> ()
    %42 = vector.shape_cast %41 : vector<2x8x8xf32> to vector<16x8xf32>
    %c0_22 = arith.constant 0 : index
    %c0_23 = arith.constant 0 : index
    %43 = vector.load %arg11[%c0_22, %c0_23] : memref<16x32xf32, #tpu.memory_space<vmem>>, vector<16x8xf32>
    tpu.vector_store %arg11[%c0_22, %c0_23], %42 {strides = array<i32>} : memref<16x32xf32, #tpu.memory_space<vmem>>, vector<16x8xf32>,
    %44 = vector.extract_strided_slice %13 {offsets = [0, 8], sizes = [16, 8], strides = [1, 1]} : vector<16x32xf32> to vector<16x8xf32>
    %45 = arith.truncf %44 : vector<16x8xf32> to vector<16x8xbf16>
    %46 = vector.shape_cast %45 : vector<16x8xbf16> to vector<2x8x8xbf16>
    %47 = vector.extract_strided_slice %7 {offsets = [0, 8], sizes = [16, 8], strides = [1, 1]} : vector<16x32xf32> to vector<16x8xf32>
    %48 = arith.truncf %47 : vector<16x8xf32> to vector<16x8xbf16>
    %49 = vector.shape_cast %48 : vector<16x8xbf16> to vector<2x8x8xbf16>
    %50 = vector.extract_strided_slice %11 {offsets = [0, 8], sizes = [16, 8], strides = [1, 1]} : vector<16x32xf32> to vector<16x8xf32>
    %51 = arith.truncf %50 : vector<16x8xf32> to vector<16x8xbf16>
    %52 = vector.shape_cast %51 : vector<16x8xbf16> to vector<2x8x8xbf16>
    "tpu.trace_start"() <{level = 10 : i32, message = "bqd,bkd->bqk"}> : () -> ()
    %cst_24 = arith.constant dense<0.000000e+00> : vector<2x8x8xf32>
    %53 = tpu.matmul %46, %49, %cst_24 {dimension_numbers = #tpu.dot_dimension_numbers<[2], [2], [1], [1], [0, 0, 0, 1, 1, 1], [0], [0]>} : vector<2x8x8xbf16>, vector<2x8x8xbf16>, vector<2x8x8xf32> -> vector<2x8x8xf32>
    %cst_25 = arith.constant -1.000000e+20 : f32
    "tpu.trace_stop"() : () -> ()
    %54 = vector.broadcast %cst_25 : f32 to vector<2x8x8xf32>
    %55 = arith.select %17, %54, %53 : vector<2x8x8xi1>, vector<2x8x8xf32>
    %cst_26 = arith.constant dense<0xFF800000> : vector<2x8xf32>
    %56 = vector.multi_reduction <maximumf>, %55, %cst_26 [2] : vector<2x8x8xf32> to vector<2x8xf32>
    %57 = vector.shape_cast %56 : vector<2x8xf32> to vector<2x8x1xf32>
    %58 = vector.broadcast %57 : vector<2x8x1xf32> to vector<2x8x8xf32>
    %59 = arith.subf %55, %58 : vector<2x8x8xf32>
    %60 = math.exp %59 : vector<2x8x8xf32>
    %cst_27 = arith.constant dense<0.000000e+00> : vector<2x8xf32>
    %61 = vector.multi_reduction <add>, %60, %cst_27 [2] : vector<2x8x8xf32> to vector<2x8xf32>
    %62 = vector.shape_cast %61 : vector<2x8xf32> to vector<2x8x1xf32>
    %63 = tpu.reciprocal %62 {approx = true} : vector<2x8x1xf32> -> vector<2x8x1xf32>
    %64 = vector.broadcast %63 : vector<2x8x1xf32> to vector<2x8x8xf32>
    %65 = arith.mulf %60, %64 : vector<2x8x8xf32>
    %66 = arith.truncf %65 : vector<2x8x8xf32> to vector<2x8x8xbf16>
    "tpu.trace_start"() <{level = 10 : i32, message = "bqk,bkd->bqd"}> : () -> ()
    %cst_28 = arith.constant dense<0.000000e+00> : vector<2x8x8xf32>
    %67 = tpu.matmul %66, %52, %cst_28 {dimension_numbers = #tpu.dot_dimension_numbers<[2], [1], [1], [2], [0, 0, 0, 1, 1, 2], [0], [0]>} : vector<2x8x8xbf16>, vector<2x8x8xbf16>, vector<2x8x8xf32> -> vector<2x8x8xf32>
    "tpu.trace_stop"() : () -> ()
    %68 = vector.shape_cast %67 : vector<2x8x8xf32> to vector<16x8xf32>
    %c0_29 = arith.constant 0 : index
    %c8 = arith.constant 8 : index
    %69 = vector.load %arg11[%c0_29, %c8] : memref<16x32xf32, #tpu.memory_space<vmem>>, vector<16x8xf32>
    tpu.vector_store %arg11[%c0_29, %c8], %68 {strides = array<i32>} : memref<16x32xf32, #tpu.memory_space<vmem>>, vector<16x8xf32>,
    %70 = vector.extract_strided_slice %13 {offsets = [0, 16], sizes = [16, 8], strides = [1, 1]} : vector<16x32xf32> to vector<16x8xf32>
    %71 = arith.truncf %70 : vector<16x8xf32> to vector<16x8xbf16>
    %72 = vector.shape_cast %71 : vector<16x8xbf16> to vector<2x8x8xbf16>
    %73 = vector.extract_strided_slice %7 {offsets = [0, 16], sizes = [16, 8], strides = [1, 1]} : vector<16x32xf32> to vector<16x8xf32>
    %74 = arith.truncf %73 : vector<16x8xf32> to vector<16x8xbf16>
    %75 = vector.shape_cast %74 : vector<16x8xbf16> to vector<2x8x8xbf16>
    %76 = vector.extract_strided_slice %11 {offsets = [0, 16], sizes = [16, 8], strides = [1, 1]} : vector<16x32xf32> to vector<16x8xf32>
    %77 = arith.truncf %76 : vector<16x8xf32> to vector<16x8xbf16>
    %78 = vector.shape_cast %77 : vector<16x8xbf16> to vector<2x8x8xbf16>
    "tpu.trace_start"() <{level = 10 : i32, message = "bqd,bkd->bqk"}> : () -> ()
    %cst_30 = arith.constant dense<0.000000e+00> : vector<2x8x8xf32>
    %79 = tpu.matmul %72, %75, %cst_30 {dimension_numbers = #tpu.dot_dimension_numbers<[2], [2], [1], [1], [0, 0, 0, 1, 1, 1], [0], [0]>} : vector<2x8x8xbf16>, vector<2x8x8xbf16>, vector<2x8x8xf32> -> vector<2x8x8xf32>
    %cst_31 = arith.constant -1.000000e+20 : f32
    "tpu.trace_stop"() : () -> ()
    %80 = vector.broadcast %cst_31 : f32 to vector<2x8x8xf32>
    %81 = arith.select %17, %80, %79 : vector<2x8x8xi1>, vector<2x8x8xf32>
    %cst_32 = arith.constant dense<0xFF800000> : vector<2x8xf32>
    %82 = vector.multi_reduction <maximumf>, %81, %cst_32 [2] : vector<2x8x8xf32> to vector<2x8xf32>
    %83 = vector.shape_cast %82 : vector<2x8xf32> to vector<2x8x1xf32>
    %84 = vector.broadcast %83 : vector<2x8x1xf32> to vector<2x8x8xf32>
    %85 = arith.subf %81, %84 : vector<2x8x8xf32>
    %86 = math.exp %85 : vector<2x8x8xf32>
    %cst_33 = arith.constant dense<0.000000e+00> : vector<2x8xf32>
    %87 = vector.multi_reduction <add>, %86, %cst_33 [2] : vector<2x8x8xf32> to vector<2x8xf32>
    %88 = vector.shape_cast %87 : vector<2x8xf32> to vector<2x8x1xf32>
    %89 = tpu.reciprocal %88 {approx = true} : vector<2x8x1xf32> -> vector<2x8x1xf32>
    %90 = vector.broadcast %89 : vector<2x8x1xf32> to vector<2x8x8xf32>
    %91 = arith.mulf %86, %90 : vector<2x8x8xf32>
    %92 = arith.truncf %91 : vector<2x8x8xf32> to vector<2x8x8xbf16>
    "tpu.trace_start"() <{level = 10 : i32, message = "bqk,bkd->bqd"}> : () -> ()
    %cst_34 = arith.constant dense<0.000000e+00> : vector<2x8x8xf32>
    %93 = tpu.matmul %92, %78, %cst_34 {dimension_numbers = #tpu.dot_dimension_numbers<[2], [1], [1], [2], [0, 0, 0, 1, 1, 2], [0], [0]>} : vector<2x8x8xbf16>, vector<2x8x8xbf16>, vector<2x8x8xf32> -> vector<2x8x8xf32>
    "tpu.trace_stop"() : () -> ()
    %94 = vector.shape_cast %93 : vector<2x8x8xf32> to vector<16x8xf32>
    %c0_35 = arith.constant 0 : index
    %c16 = arith.constant 16 : index
    %95 = vector.load %arg11[%c0_35, %c16] : memref<16x32xf32, #tpu.memory_space<vmem>>, vector<16x8xf32>
    tpu.vector_store %arg11[%c0_35, %c16], %94 {strides = array<i32>} : memref<16x32xf32, #tpu.memory_space<vmem>>, vector<16x8xf32>,
    %96 = vector.extract_strided_slice %13 {offsets = [0, 24], sizes = [16, 8], strides = [1, 1]} : vector<16x32xf32> to vector<16x8xf32>
    %97 = arith.truncf %96 : vector<16x8xf32> to vector<16x8xbf16>
    %98 = vector.shape_cast %97 : vector<16x8xbf16> to vector<2x8x8xbf16>
    %99 = vector.extract_strided_slice %7 {offsets = [0, 24], sizes = [16, 8], strides = [1, 1]} : vector<16x32xf32> to vector<16x8xf32>
    %100 = arith.truncf %99 : vector<16x8xf32> to vector<16x8xbf16>
    %101 = vector.shape_cast %100 : vector<16x8xbf16> to vector<2x8x8xbf16>
    %102 = vector.extract_strided_slice %11 {offsets = [0, 24], sizes = [16, 8], strides = [1, 1]} : vector<16x32xf32> to vector<16x8xf32>
    %103 = arith.truncf %102 : vector<16x8xf32> to vector<16x8xbf16>
    %104 = vector.shape_cast %103 : vector<16x8xbf16> to vector<2x8x8xbf16>
    "tpu.trace_start"() <{level = 10 : i32, message = "bqd,bkd->bqk"}> : () -> ()
    %cst_36 = arith.constant dense<0.000000e+00> : vector<2x8x8xf32>
    %105 = tpu.matmul %98, %101, %cst_36 {dimension_numbers = #tpu.dot_dimension_numbers<[2], [2], [1], [1], [0, 0, 0, 1, 1, 1], [0], [0]>} : vector<2x8x8xbf16>, vector<2x8x8xbf16>, vector<2x8x8xf32> -> vector<2x8x8xf32>
    %cst_37 = arith.constant -1.000000e+20 : f32
    "tpu.trace_stop"() : () -> ()
    %106 = vector.broadcast %cst_37 : f32 to vector<2x8x8xf32>
    %107 = arith.select %17, %106, %105 : vector<2x8x8xi1>, vector<2x8x8xf32>
    %cst_38 = arith.constant dense<0xFF800000> : vector<2x8xf32>
    %108 = vector.multi_reduction <maximumf>, %107, %cst_38 [2] : vector<2x8x8xf32> to vector<2x8xf32>
    %109 = vector.shape_cast %108 : vector<2x8xf32> to vector<2x8x1xf32>
    %110 = vector.broadcast %109 : vector<2x8x1xf32> to vector<2x8x8xf32>
    %111 = arith.subf %107, %110 : vector<2x8x8xf32>
    %112 = math.exp %111 : vector<2x8x8xf32>
    %cst_39 = arith.constant dense<0.000000e+00> : vector<2x8xf32>
    %113 = vector.multi_reduction <add>, %112, %cst_39 [2] : vector<2x8x8xf32> to vector<2x8xf32>
    %114 = vector.shape_cast %113 : vector<2x8xf32> to vector<2x8x1xf32>
    %115 = tpu.reciprocal %114 {approx = true} : vector<2x8x1xf32> -> vector<2x8x1xf32>
    %116 = vector.broadcast %115 : vector<2x8x1xf32> to vector<2x8x8xf32>
    %117 = arith.mulf %112, %116 : vector<2x8x8xf32>
    %118 = arith.truncf %117 : vector<2x8x8xf32> to vector<2x8x8xbf16>
    "tpu.trace_start"() <{level = 10 : i32, message = "bqk,bkd->bqd"}> : () -> ()
    %cst_40 = arith.constant dense<0.000000e+00> : vector<2x8x8xf32>
    %119 = tpu.matmul %118, %104, %cst_40 {dimension_numbers = #tpu.dot_dimension_numbers<[2], [1], [1], [2], [0, 0, 0, 1, 1, 2], [0], [0]>} : vector<2x8x8xbf16>, vector<2x8x8xbf16>, vector<2x8x8xf32> -> vector<2x8x8xf32>
    "tpu.trace_stop"() : () -> ()
    %120 = vector.shape_cast %119 : vector<2x8x8xf32> to vector<16x8xf32>
    %c0_41 = arith.constant 0 : index
    %c24 = arith.constant 24 : index
    %121 = vector.load %arg11[%c0_41, %c24] : memref<16x32xf32, #tpu.memory_space<vmem>>, vector<16x8xf32>
    tpu.vector_store %arg11[%c0_41, %c24], %120 {strides = array<i32>} : memref<16x32xf32, #tpu.memory_space<vmem>>, vector<16x8xf32>,
    %c0_42 = arith.constant 0 : index
    %c0_43 = arith.constant 0 : index
    %122 = vector.load %arg11[%c0_42, %c0_43] : memref<16x32xf32, #tpu.memory_space<vmem>>, vector<16x32xf32>
    %123 = arith.truncf %122 : vector<16x32xf32> to vector<16x32xbf16>
    %c0_44 = arith.constant 0 : index
    %c0_45 = arith.constant 0 : index
    %124 = vector.load %arg8[%c0_44, %c0_45] : memref<32x32xbf16, #tpu.memory_space<vmem>>, vector<32x32xbf16>
    %cst_46 = arith.constant dense<0.000000e+00> : vector<16x32xf32>
    %125 = tpu.matmul %123, %124, %cst_46 {dimension_numbers = #tpu.dot_dimension_numbers<[1], [0], [0], [1], [0, 0, 1, 1], [], []>} : vector<16x32xbf16>, vector<32x32xbf16>, vector<16x32xf32> -> vector<16x32xf32>
    %c0_47 = arith.constant 0 : index
    %c0_48 = arith.constant 0 : index
    %126 = vector.load %arg9[%c0_47, %c0_48] : memref<1x32xf32, #tpu.memory_space<vmem>>, vector<1x32xf32>
    %127 = vector.broadcast %126 : vector<1x32xf32> to vector<16x32xf32>
    %128 = arith.addf %125, %127 : vector<16x32xf32>
    %129 = vector.shape_cast %128 : vector<16x32xf32> to vector<2x8x32xf32>
    %130 = vector.extract_strided_slice %129 {offsets = [0, 0, 0], sizes = [2, 1, 32], strides = [1, 1, 1]} : vector<2x8x32xf32> to vector<2x1x32xf32>
    %131 = vector.shape_cast %130 : vector<2x1x32xf32> to vector<2x32xf32>
    %c0_49 = arith.constant 0 : index
    %c0_50 = arith.constant 0 : index
    %c0_51 = arith.constant 0 : index
    %132 = vector.load %arg10[%c0_49, %c0_50, %c0_51] : memref<1x2x256xf32, #tpu.memory_space<vmem>>, vector<1x2x32xf32>
    %133 = vector.shape_cast %132 : vector<1x2x32xf32> to vector<2x32xf32>
    %134 = vector.shape_cast %131 : vector<2x32xf32> to vector<1x2x32xf32>
    tpu.vector_store %arg10[%c0_49, %c0_50, %c0_51], %134 {strides = array<i32>} : memref<1x2x256xf32, #tpu.memory_space<vmem>>, vector<1x2x32xf32>,
    %135 = vector.extract_strided_slice %129 {offsets = [0, 1, 0], sizes = [2, 1, 32], strides = [1, 1, 1]} : vector<2x8x32xf32> to vector<2x1x32xf32>
    %136 = vector.shape_cast %135 : vector<2x1x32xf32> to vector<2x32xf32>
    %c0_52 = arith.constant 0 : index
    %c0_53 = arith.constant 0 : index
    %c32 = arith.constant 32 : index
    %137 = vector.load %arg10[%c0_52, %c0_53, %c32] : memref<1x2x256xf32, #tpu.memory_space<vmem>>, vector<1x2x32xf32>
    %138 = vector.shape_cast %137 : vector<1x2x32xf32> to vector<2x32xf32>
    %139 = vector.shape_cast %136 : vector<2x32xf32> to vector<1x2x32xf32>
    tpu.vector_store %arg10[%c0_52, %c0_53, %c32], %139 {strides = array<i32>} : memref<1x2x256xf32, #tpu.memory_space<vmem>>, vector<1x2x32xf32>,
    %140 = vector.extract_strided_slice %129 {offsets = [0, 2, 0], sizes = [2, 1, 32], strides = [1, 1, 1]} : vector<2x8x32xf32> to vector<2x1x32xf32>
    %141 = vector.shape_cast %140 : vector<2x1x32xf32> to vector<2x32xf32>
    %c0_54 = arith.constant 0 : index
    %c0_55 = arith.constant 0 : index
    %c64 = arith.constant 64 : index
    %142 = vector.load %arg10[%c0_54, %c0_55, %c64] : memref<1x2x256xf32, #tpu.memory_space<vmem>>, vector<1x2x32xf32>
    %143 = vector.shape_cast %142 : vector<1x2x32xf32> to vector<2x32xf32>
    %144 = vector.shape_cast %141 : vector<2x32xf32> to vector<1x2x32xf32>
    tpu.vector_store %arg10[%c0_54, %c0_55, %c64], %144 {strides = array<i32>} : memref<1x2x256xf32, #tpu.memory_space<vmem>>, vector<1x2x32xf32>,
    %145 = vector.extract_strided_slice %129 {offsets = [0, 3, 0], sizes = [2, 1, 32], strides = [1, 1, 1]} : vector<2x8x32xf32> to vector<2x1x32xf32>
    %146 = vector.shape_cast %145 : vector<2x1x32xf32> to vector<2x32xf32>
    %c0_56 = arith.constant 0 : index
    %c0_57 = arith.constant 0 : index
    %c96 = arith.constant 96 : index
    %147 = vector.load %arg10[%c0_56, %c0_57, %c96] : memref<1x2x256xf32, #tpu.memory_space<vmem>>, vector<1x2x32xf32>
    %148 = vector.shape_cast %147 : vector<1x2x32xf32> to vector<2x32xf32>
    %149 = vector.shape_cast %146 : vector<2x32xf32> to vector<1x2x32xf32>
    tpu.vector_store %arg10[%c0_56, %c0_57, %c96], %149 {strides = array<i32>} : memref<1x2x256xf32, #tpu.memory_space<vmem>>, vector<1x2x32xf32>,
    %150 = vector.extract_strided_slice %129 {offsets = [0, 4, 0], sizes = [2, 1, 32], strides = [1, 1, 1]} : vector<2x8x32xf32> to vector<2x1x32xf32>
    %151 = vector.shape_cast %150 : vector<2x1x32xf32> to vector<2x32xf32>
    %c0_58 = arith.constant 0 : index
    %c0_59 = arith.constant 0 : index
    %c128 = arith.constant 128 : index
    %152 = vector.load %arg10[%c0_58, %c0_59, %c128] : memref<1x2x256xf32, #tpu.memory_space<vmem>>, vector<1x2x32xf32>
    %153 = vector.shape_cast %152 : vector<1x2x32xf32> to vector<2x32xf32>
    %154 = vector.shape_cast %151 : vector<2x32xf32> to vector<1x2x32xf32>
    tpu.vector_store %arg10[%c0_58, %c0_59, %c128], %154 {strides = array<i32>} : memref<1x2x256xf32, #tpu.memory_space<vmem>>, vector<1x2x32xf32>,
    %155 = vector.extract_strided_slice %129 {offsets = [0, 5, 0], sizes = [2, 1, 32], strides = [1, 1, 1]} : vector<2x8x32xf32> to vector<2x1x32xf32>
    %156 = vector.shape_cast %155 : vector<2x1x32xf32> to vector<2x32xf32>
    %c0_60 = arith.constant 0 : index
    %c0_61 = arith.constant 0 : index
    %c160 = arith.constant 160 : index
    %157 = vector.load %arg10[%c0_60, %c0_61, %c160] : memref<1x2x256xf32, #tpu.memory_space<vmem>>, vector<1x2x32xf32>
    %158 = vector.shape_cast %157 : vector<1x2x32xf32> to vector<2x32xf32>
    %159 = vector.shape_cast %156 : vector<2x32xf32> to vector<1x2x32xf32>
    tpu.vector_store %arg10[%c0_60, %c0_61, %c160], %159 {strides = array<i32>} : memref<1x2x256xf32, #tpu.memory_space<vmem>>, vector<1x2x32xf32>,
    %160 = vector.extract_strided_slice %129 {offsets = [0, 6, 0], sizes = [2, 1, 32], strides = [1, 1, 1]} : vector<2x8x32xf32> to vector<2x1x32xf32>
    %161 = vector.shape_cast %160 : vector<2x1x32xf32> to vector<2x32xf32>
    %c0_62 = arith.constant 0 : index
    %c0_63 = arith.constant 0 : index
    %c192 = arith.constant 192 : index
    %162 = vector.load %arg10[%c0_62, %c0_63, %c192] : memref<1x2x256xf32, #tpu.memory_space<vmem>>, vector<1x2x32xf32>
    %163 = vector.shape_cast %162 : vector<1x2x32xf32> to vector<2x32xf32>
    %164 = vector.shape_cast %161 : vector<2x32xf32> to vector<1x2x32xf32>
    tpu.vector_store %arg10[%c0_62, %c0_63, %c192], %164 {strides = array<i32>} : memref<1x2x256xf32, #tpu.memory_space<vmem>>, vector<1x2x32xf32>,
    %165 = vector.extract_strided_slice %129 {offsets = [0, 7, 0], sizes = [2, 1, 32], strides = [1, 1, 1]} : vector<2x8x32xf32> to vector<2x1x32xf32>
    %166 = vector.shape_cast %165 : vector<2x1x32xf32> to vector<2x32xf32>
    %c0_64 = arith.constant 0 : index
    %c0_65 = arith.constant 0 : index
    %c224 = arith.constant 224 : index
    %167 = vector.load %arg10[%c0_64, %c0_65, %c224] : memref<1x2x256xf32, #tpu.memory_space<vmem>>, vector<1x2x32xf32>
    %168 = vector.shape_cast %167 : vector<1x2x32xf32> to vector<2x32xf32>
    %169 = vector.shape_cast %166 : vector<2x32xf32> to vector<1x2x32xf32>
    tpu.vector_store %arg10[%c0_64, %c0_65, %c224], %169 {strides = array<i32>} : memref<1x2x256xf32, #tpu.memory_space<vmem>>, vector<1x2x32xf32>,
    return
  }
  func.func @transform_0(%arg0: i32) -> (i32, i32) {
    %c0_i32 = arith.constant 0 : i32
    %c0_i32_0 = arith.constant 0 : i32
    return %arg0, %c0_i32 : i32, i32
  }
  func.func @transform_1(%arg0: i32) -> (i32, i32) {
    %c0_i32 = arith.constant 0 : i32
    %c0_i32_0 = arith.constant 0 : i32
    return %arg0, %c0_i32 : i32, i32
  }
  func.func @transform_2(%arg0: i32) -> (i32, i32) {
    %c0_i32 = arith.constant 0 : i32
    %c0_i32_0 = arith.constant 0 : i32
    return %arg0, %c0_i32 : i32, i32
  }
  func.func @transform_3(%arg0: i32) -> (i32, i32, i32) {
    %c0_i32 = arith.constant 0 : i32
    %c0_i32_0 = arith.constant 0 : i32
    %c0_i32_1 = arith.constant 0 : i32
    return %arg0, %c0_i32, %c0_i32_0 : i32, i32, i32
  }
  func.func @transform_4(%arg0: i32) -> (i32, i32) {
    %c0_i32 = arith.constant 0 : i32
    %c0_i32_0 = arith.constant 0 : i32
    %c0_i32_1 = arith.constant 0 : i32
    return %c0_i32, %c0_i32_0 : i32, i32
  }
  func.func @transform_5(%arg0: i32) -> (i32, i32) {
    %c0_i32 = arith.constant 0 : i32
    %c0_i32_0 = arith.constant 0 : i32
    %c0_i32_1 = arith.constant 0 : i32
    return %c0_i32, %c0_i32_0 : i32, i32
  }
  func.func @transform_6(%arg0: i32) -> (i32, i32) {
    %c0_i32 = arith.constant 0 : i32
    %c0_i32_0 = arith.constant 0 : i32
    %c0_i32_1 = arith.constant 0 : i32
    return %c0_i32, %c0_i32_0 : i32, i32
  }
  func.func @transform_7(%arg0: i32) -> (i32, i32) {
    %c0_i32 = arith.constant 0 : i32
    %c0_i32_0 = arith.constant 0 : i32
    %c0_i32_1 = arith.constant 0 : i32
    return %c0_i32, %c0_i32_0 : i32, i32
  }
  func.func @transform_8(%arg0: i32) -> (i32, i32) {
    %c0_i32 = arith.constant 0 : i32
    %c0_i32_0 = arith.constant 0 : i32
    %c0_i32_1 = arith.constant 0 : i32
    return %c0_i32, %c0_i32_0 : i32, i32
  }
  func.func @transform_9(%arg0: i32) -> (i32, i32, i32) {
    %c0_i32 = arith.constant 0 : i32
    %c0_i32_0 = arith.constant 0 : i32
    %c0_i32_1 = arith.constant 0 : i32
    return %arg0, %c0_i32, %c0_i32_0 : i32, i32, i32
  }
}

</mosaic_0001>

<llo_original>
// kernel: tpu_custom_call.1
$region0: #{tpu_custom_call.1}
  #allocation0 [shape = 'u32[]', space=smem, size = 0x4, offset = 0x4, fixed_abs, tag = 'smem constant byte address 0x4 - core index']
  #allocation1 [shape = 'u32[144,128]{1,0:T(1,128)}', space=vmem, size = 0x12000, scoped, tag = 'internal scratch']
  #allocation2 [shape = 'f32[16,32]{1,0:T(8,128)}', space=vmem, size = 0x2000, scoped, tag = 'scratch operand']
  %s0 = inlined_call_operand.hbm [shape: f32[16,32], index: 0, kind: input, shape index: {}]
  %s1 = inlined_call_operand.hbm [shape: f32[16,32], index: 1, kind: input, shape index: {}]
  %s2 = inlined_call_operand.hbm [shape: f32[16,32], index: 2, kind: input, shape index: {}]
  %s3 = inlined_call_operand.hbm [shape: s8[2,8,8], index: 3, kind: input, shape index: {}]
  %s4 = inlined_call_operand.hbm [shape: bf16[32,32], index: 4, kind: input, shape index: {}]
  %s5 = inlined_call_operand.vmem [shape: bf16[32,32], index: 5, kind: input, shape index: {}]
  %s6 = inlined_call_operand.hbm [shape: bf16[32,32], index: 6, kind: input, shape index: {}]
  %s7 = inlined_call_operand.hbm [shape: bf16[32,32], index: 7, kind: input, shape index: {}]
  %s8 = inlined_call_operand.vmem [shape: f32[1,32], index: 8, kind: input, shape index: {}]
  %s9 = inlined_call_operand.hbm [shape: f32[1,2,256], index: 9, kind: output, shape index: {}]
  %s10 = sld [smem:[#allocation0]]
  $region74: #{tpu_custom_call.1} parent=0
    _
  %s12 = ssub.s32 1, %s10
  %s13 = scalar_select 0, %s12, %s10
  $region1: #{tpu_custom_call.1} parent=0
    #allocation3 [shape = 'u8[8192]{0}', space=vmem, size = 0x2000, scoped, tag = 'input window, operand 0, single buffered']
    #allocation4 [shape = 's32[1]{0}', space=sflag, size = 0x4, scoped, tag = 'scoped memory for tpu_custom_call.1']
    #allocation5 [shape = 's32[1]{0}', space=sflag, size = 0x4, scoped, tag = 'scoped memory for tpu_custom_call.1']
    #allocation6 [shape = 'u8[8192]{0}', space=vmem, size = 0x2000, scoped, tag = 'input window, operand 1, single buffered']
    #allocation7 [shape = 's32[1]{0}', space=sflag, size = 0x4, scoped, tag = 'scoped memory for tpu_custom_call.1']
    #allocation8 [shape = 'u8[8192]{0}', space=vmem, size = 0x2000, scoped, tag = 'input window, operand 2, single buffered']
    #allocation9 [shape = 'u8[2048]{0}', space=vmem, size = 0x800, scoped, tag = 'input window, operand 3, single buffered']
    #allocation10 [shape = 's32[1]{0}', space=sflag, size = 0x4, scoped, tag = 'scoped memory for tpu_custom_call.1']
    #allocation11 [shape = 'u8[8192]{0}', space=vmem, size = 0x2000, scoped, tag = 'input window, operand 4, single buffered']
    #allocation12 [shape = 'u8[8192]{0}', space=vmem, size = 0x2000, scoped, tag = 'input window, operand 6, single buffered']
    #allocation13 [shape = 's32[1]{0}', space=sflag, size = 0x4, scoped, tag = 'scoped memory for tpu_custom_call.1']
    #allocation14 [shape = 'u8[8192]{0}', space=vmem, size = 0x2000, scoped, tag = 'input window, operand 7, single buffered']
    #allocation15 [shape = 'u8[2048]{0}', space=vmem, size = 0x800, scoped, tag = 'output window, operand 0, single buffered']
    %14 = vsyncpa [#allocation4], 0
    %15 = vsyncpa [#allocation7], 0
    %16 = vsyncpa [#allocation10], 0
    %17 = vsyncpa [#allocation13], 0
    %18 = vsyncpa [#allocation5], 0
    // Predicated region
    $region2: #{tpu_custom_call.1} parent=1 // pred_check
      _
    $region3: #{tpu_custom_call.1} parent=1 // pred_check_branch
      %20 = sbr.rel (0) target = $region5
    $region4: #{tpu_custom_call.1} parent=1 // pred_region
      %s22 = ssub.s32 256, 256
      %23 = vsyncadd [#allocation4], %s22
      %s24 = sshll.u32 [#allocation3], 4
      %s25 = int_to_ptr.vmem [resolvable:$true] %s24
      %30 = dma.hbm_to_vmem [thread:$0]  %s0, 256, %s25, [#allocation4], 128, 128, 8
    $region5: #{tpu_custom_call.1} parent=1 // pred_fallthru
      _
    // Predicated region
    $region6: #{tpu_custom_call.1} parent=1 // pred_check
      _
    $region7: #{tpu_custom_call.1} parent=1 // pred_check_branch
      %32 = sbr.rel (0) target = $region9
    $region8: #{tpu_custom_call.1} parent=1 // pred_region
      %s34 = ssub.s32 256, 256
      %35 = vsyncadd [#allocation7], %s34
      %s36 = sshll.u32 [#allocation6], 4
      %s37 = int_to_ptr.vmem [resolvable:$true] %s36
      %42 = dma.hbm_to_vmem [thread:$0]  %s1, 256, %s37, [#allocation7], 128, 128, 8
    $region9: #{tpu_custom_call.1} parent=1 // pred_fallthru
      _
    // Predicated region
    $region10: #{tpu_custom_call.1} parent=1 // pred_check
      _
    $region11: #{tpu_custom_call.1} parent=1 // pred_check_branch
      %44 = sbr.rel (0) target = $region13
    $region12: #{tpu_custom_call.1} parent=1 // pred_region
      %s46 = ssub.s32 256, 256
      %47 = vsyncadd [#allocation7], %s46
      %s48 = sshll.u32 [#allocation8], 4
      %s49 = int_to_ptr.vmem [resolvable:$true] %s48
      %54 = dma.hbm_to_vmem [thread:$0]  %s2, 256, %s49, [#allocation7], 128, 128, 8
    $region13: #{tpu_custom_call.1} parent=1 // pred_fallthru
      _
    // Predicated region
    $region14: #{tpu_custom_call.1} parent=1 // pred_check
      _
    $region15: #{tpu_custom_call.1} parent=1 // pred_check_branch
      %56 = sbr.rel (0) target = $region17
    $region16: #{tpu_custom_call.1} parent=1 // pred_region
      %s58 = ssub.s32 64, 64
      %59 = vsyncadd [#allocation10], %s58
      %s60 = sshll.u32 [#allocation9], 4
      %s61 = int_to_ptr.vmem [resolvable:$true] %s60
      %66 = dma.hbm_to_vmem [thread:$0]  %s3, 64, %s61, [#allocation10], 32, 32, 2
    $region17: #{tpu_custom_call.1} parent=1 // pred_fallthru
      _
    // Predicated region
    $region18: #{tpu_custom_call.1} parent=1 // pred_check
      _
    $region19: #{tpu_custom_call.1} parent=1 // pred_check_branch
      %68 = sbr.rel (0) target = $region21
    $region20: #{tpu_custom_call.1} parent=1 // pred_region
      %s70 = ssub.s32 256, 256
      %71 = vsyncadd [#allocation10], %s70
      %s72 = sshll.u32 [#allocation11], 4
      %s73 = int_to_ptr.vmem [resolvable:$true] %s72
      %78 = dma.hbm_to_vmem [thread:$0]  %s4, 256, %s73, [#allocation10], 64, 64, 4
    $region21: #{tpu_custom_call.1} parent=1 // pred_fallthru
      _
    // Predicated region
    $region22: #{tpu_custom_call.1} parent=1 // pred_check
      _
    $region23: #{tpu_custom_call.1} parent=1 // pred_check_branch
      %80 = sbr.rel (0) target = $region25
    $region24: #{tpu_custom_call.1} parent=1 // pred_region
      _
    $region25: #{tpu_custom_call.1} parent=1 // pred_fallthru
      _
    // Predicated region
    $region26: #{tpu_custom_call.1} parent=1 // pred_check
      _
    $region27: #{tpu_custom_call.1} parent=1 // pred_check_branch
      %82 = sbr.rel (0) target = $region29
    $region28: #{tpu_custom_call.1} parent=1 // pred_region
      %s84 = ssub.s32 256, 256
      %85 = vsyncadd [#allocation13], %s84
      %s86 = sshll.u32 [#allocation12], 4
      %s87 = int_to_ptr.vmem [resolvable:$true] %s86
      %92 = dma.hbm_to_vmem [thread:$0]  %s6, 256, %s87, [#allocation13], 64, 64, 4
    $region29: #{tpu_custom_call.1} parent=1 // pred_fallthru
      _
    // Predicated region
    $region30: #{tpu_custom_call.1} parent=1 // pred_check
      _
    $region31: #{tpu_custom_call.1} parent=1 // pred_check_branch
      %94 = sbr.rel (0) target = $region33
    $region32: #{tpu_custom_call.1} parent=1 // pred_region
      %s96 = ssub.s32 256, 256
      %97 = vsyncadd [#allocation13], %s96
      %s98 = sshll.u32 [#allocation14], 4
      %s99 = int_to_ptr.vmem [resolvable:$true] %s98
      %104 = dma.hbm_to_vmem [thread:$0]  %s7, 256, %s99, [#allocation13], 64, 64, 4
    $region33: #{tpu_custom_call.1} parent=1 // pred_fallthru
      _
    // Predicated region
    $region34: #{tpu_custom_call.1} parent=1 // pred_check
      _
    $region35: #{tpu_custom_call.1} parent=1 // pred_check_branch
      %106 = sbr.rel (0) target = $region37
    $region36: #{tpu_custom_call.1} parent=1 // pred_region
      _
    $region37: #{tpu_custom_call.1} parent=1 // pred_fallthru
      _
    // Predicated region
    $region38: #{tpu_custom_call.1} parent=1 // pred_check
      _
    $region39: #{tpu_custom_call.1} parent=1 // pred_check_branch
      %108 = sbr.rel (0) target = $region41
    $region40: #{tpu_custom_call.1} parent=1 // pred_region
      %109 = dma.done [#allocation4], 256
    $region41: #{tpu_custom_call.1} parent=1 // pred_fallthru
      _
    // Predicated region
    $region42: #{tpu_custom_call.1} parent=1 // pred_check
      _
    $region43: #{tpu_custom_call.1} parent=1 // pred_check_branch
      %111 = sbr.rel (0) target = $region45
    $region44: #{tpu_custom_call.1} parent=1 // pred_region
      %112 = dma.done [#allocation7], 256
    $region45: #{tpu_custom_call.1} parent=1 // pred_fallthru
      _
    // Predicated region
    $region46: #{tpu_custom_call.1} parent=1 // pred_check
      _
    $region47: #{tpu_custom_call.1} parent=1 // pred_check_branch
      %114 = sbr.rel (0) target = $region49
    $region48: #{tpu_custom_call.1} parent=1 // pred_region
      %115 = dma.done [#allocation7], 256
    $region49: #{tpu_custom_call.1} parent=1 // pred_fallthru
      _
    // Predicated region
    $region50: #{tpu_custom_call.1} parent=1 // pred_check
      _
    $region51: #{tpu_custom_call.1} parent=1 // pred_check_branch
      %117 = sbr.rel (0) target = $region53
    $region52: #{tpu_custom_call.1} parent=1 // pred_region
      %118 = dma.done [#allocation10], 64
    $region53: #{tpu_custom_call.1} parent=1 // pred_fallthru
      _
    // Predicated region
    $region54: #{tpu_custom_call.1} parent=1 // pred_check
      _
    $region55: #{tpu_custom_call.1} parent=1 // pred_check_branch
      %120 = sbr.rel (0) target = $region57
    $region56: #{tpu_custom_call.1} parent=1 // pred_region
      %121 = dma.done [#allocation10], 256
    $region57: #{tpu_custom_call.1} parent=1 // pred_fallthru
      _
    // Predicated region
    $region58: #{tpu_custom_call.1} parent=1 // pred_check
      _
    $region59: #{tpu_custom_call.1} parent=1 // pred_check_branch
      %123 = sbr.rel (0) target = $region61
    $region60: #{tpu_custom_call.1} parent=1 // pred_region
      %124 = dma.done [#allocation13], 256
    $region61: #{tpu_custom_call.1} parent=1 // pred_fallthru
      _
    // Predicated region
    $region62: #{tpu_custom_call.1} parent=1 // pred_check
      _
    $region63: #{tpu_custom_call.1} parent=1 // pred_check_branch
      %126 = sbr.rel (0) target = $region65
    $region64: #{tpu_custom_call.1} parent=1 // pred_region
      %127 = dma.done [#allocation13], 256
    $region65: #{tpu_custom_call.1} parent=1 // pred_fallthru
      _
    %v129 = vld [vmem:[#allocation3] sm:$0xff]
    %v130 = vld [vmem:[#allocation3 + $0x8] sm:$0xff]
    %v131 = vpack.c.bf16 %v130, %v129
    %v132 = vld [vmem:[#allocation11] sm:$0xf]
    %v133 = vld [vmem:[#allocation11 + $0x4] sm:$0xf]
    %v134 = vld [vmem:[#allocation11 + $0x8] sm:$0xf]
    %v135 = vld [vmem:[#allocation11 + $0xc] sm:$0xf]
    %v140 = vunpack.c.l.b16 %v132
    %v141 = vunpack.c.l.b16 %v133
    %v142 = vunpack.c.l.b16 %v134
    %v143 = vunpack.c.l.b16 %v135
    %v144 = vpack.c.b16 %v141, %v140
    %v145 = vpack.c.b16 %v143, %v142
    %vm148 = vcmask 261120
    %v150 = vsel %vm148, %v131, 0
    %152 = vmatprep.subr.bf16.mxu0 0
    %153 = vmatpush1.bf16.msra.mxu0 %v144
    %154 = vmatprep.subr.bf16.mxu0 0
    %155 = vmatpush1.bf16.msra.mxu0 %v145
    %156 = vmatprep.subr.bf16.mxu0 0
    %157 = vmatpush1.bf16.msra.mxu0 0
    %158 = vmatprep.subr.bf16.mxu0 0
    %159 = vmatpush1.bf16.msra.mxu0 0
    %160 = vmatprep.subr.bf16.mxu0 0
    %161 = vmatpush1.bf16.msra.mxu0 0
    %162 = vmatprep.subr.bf16.mxu0 0
    %163 = vmatpush1.bf16.msra.mxu0 0
    %164 = vmatprep.subr.bf16.mxu0 0
    %165 = vmatpush1.bf16.msra.mxu0 0
    %166 = vmatprep.subr.bf16.mxu0 0
    %167 = vmatpush1.bf16.msra.mxu0 0
    %168 = vmatprep.subr.bf16.mxu0 0
    %169 = vmatpush1.bf16.msra.mxu0 0
    %170 = vmatprep.subr.bf16.mxu0 0
    %171 = vmatpush1.bf16.msra.mxu0 0
    %172 = vmatprep.subr.bf16.mxu0 0
    %173 = vmatpush1.bf16.msra.mxu0 0
    %174 = vmatprep.subr.bf16.mxu0 0
    %175 = vmatpush1.bf16.msra.mxu0 0
    %176 = vmatprep.subr.bf16.mxu0 0
    %177 = vmatpush1.bf16.msra.mxu0 0
    %178 = vmatprep.subr.bf16.mxu0 0
    %179 = vmatpush1.bf16.msra.mxu0 0
    %180 = vmatprep.subr.bf16.mxu0 0
    %181 = vmatpush1.bf16.msra.mxu0 0
    %182 = vmatprep.subr.bf16.mxu0 0
    %183 = vmatpush1.bf16.msra.mxu0 0
    %184 = vmatprep.mubr.bf16.mxu0 0
    %185 = vmatmul.mubr.bf16.gmra.mrb[0].mxu0 %v150
    %v186 = vpop.f32.mrb[0].mxu0
    %v187 = vadd.f32 0.0, %v186
    %v188 = vpop.f32.mrb[0].mxu0
    %v189 = vpop.f32.mrb[0].mxu0
    %v190 = vadd.f32 0.0, %v189
    %v191 = vpop.f32.mrb[0].mxu0
    %192 = vdwg.mxu0
    %v193 = vld [vmem:[#allocation6] sm:$0xff]
    %v194 = vld [vmem:[#allocation6 + $0x8] sm:$0xff]
    %v195 = vpack.c.bf16 %v194, %v193
    %v196 = vld [vmem:[%s5] sm:$0xf]
    %v197 = vld [vmem:[%s5 + $0x4] sm:$0xf]
    %v198 = vld [vmem:[%s5 + $0x8] sm:$0xf]
    %v199 = vld [vmem:[%s5 + $0xc] sm:$0xf]
    %v204 = vunpack.c.l.b16 %v196
    %v205 = vunpack.c.l.b16 %v197
    %v206 = vunpack.c.l.b16 %v198
    %v207 = vunpack.c.l.b16 %v199
    %v208 = vpack.c.b16 %v205, %v204
    %v209 = vpack.c.b16 %v207, %v206
    %v213 = vsel %vm148, %v195, 0
    %215 = vmatprep.subr.bf16.mxu0 0
    %216 = vmatpush1.bf16.msra.mxu0 %v208
    %217 = vmatprep.subr.bf16.mxu0 0
    %218 = vmatpush1.bf16.msra.mxu0 %v209
    %219 = vmatprep.subr.bf16.mxu0 0
    %220 = vmatpush1.bf16.msra.mxu0 0
    %221 = vmatprep.subr.bf16.mxu0 0
    %222 = vmatpush1.bf16.msra.mxu0 0
    %223 = vmatprep.subr.bf16.mxu0 0
    %224 = vmatpush1.bf16.msra.mxu0 0
    %225 = vmatprep.subr.bf16.mxu0 0
    %226 = vmatpush1.bf16.msra.mxu0 0
    %227 = vmatprep.subr.bf16.mxu0 0
    %228 = vmatpush1.bf16.msra.mxu0 0
    %229 = vmatprep.subr.bf16.mxu0 0
    %230 = vmatpush1.bf16.msra.mxu0 0
    %231 = vmatprep.subr.bf16.mxu0 0
    %232 = vmatpush1.bf16.msra.mxu0 0
    %233 = vmatprep.subr.bf16.mxu0 0
    %234 = vmatpush1.bf16.msra.mxu0 0
    %235 = vmatprep.subr.bf16.mxu0 0
    %236 = vmatpush1.bf16.msra.mxu0 0
    %237 = vmatprep.subr.bf16.mxu0 0
    %238 = vmatpush1.bf16.msra.mxu0 0
    %239 = vmatprep.subr.bf16.mxu0 0
    %240 = vmatpush1.bf16.msra.mxu0 0
    %241 = vmatprep.subr.bf16.mxu0 0
    %242 = vmatpush1.bf16.msra.mxu0 0
    %243 = vmatprep.subr.bf16.mxu0 0
    %244 = vmatpush1.bf16.msra.mxu0 0
    %245 = vmatprep.subr.bf16.mxu0 0
    %246 = vmatpush1.bf16.msra.mxu0 0
    %247 = vmatprep.mubr.bf16.mxu0 0
    %248 = vmatmul.mubr.bf16.gmra.mrb[0].mxu0 %v213
    %v249 = vpop.f32.mrb[0].mxu0
    %v250 = vadd.f32 0.0, %v249
    %v251 = vpop.f32.mrb[0].mxu0
    %v252 = vpop.f32.mrb[0].mxu0
    %v253 = vadd.f32 0.0, %v252
    %v254 = vpop.f32.mrb[0].mxu0
    %255 = vdwg.mxu0
    %v256 = vld [vmem:[#allocation8] sm:$0xff]
    %v257 = vld [vmem:[#allocation8 + $0x8] sm:$0xff]
    %v258 = vpack.c.bf16 %v257, %v256
    %v259 = vld [vmem:[#allocation12] sm:$0xf]
    %v260 = vld [vmem:[#allocation12 + $0x4] sm:$0xf]
    %v261 = vld [vmem:[#allocation12 + $0x8] sm:$0xf]
    %v262 = vld [vmem:[#allocation12 + $0xc] sm:$0xf]
    %v267 = vunpack.c.l.b16 %v259
    %v268 = vunpack.c.l.b16 %v260
    %v269 = vunpack.c.l.b16 %v261
    %v270 = vunpack.c.l.b16 %v262
    %v271 = vpack.c.b16 %v268, %v267
    %v272 = vpack.c.b16 %v270, %v269
    %v276 = vsel %vm148, %v258, 0
    %278 = vmatprep.subr.bf16.mxu0 0
    %279 = vmatpush1.bf16.msra.mxu0 %v271
    %280 = vmatprep.subr.bf16.mxu0 0
    %281 = vmatpush1.bf16.msra.mxu0 %v272
    %282 = vmatprep.subr.bf16.mxu0 0
    %283 = vmatpush1.bf16.msra.mxu0 0
    %284 = vmatprep.subr.bf16.mxu0 0
    %285 = vmatpush1.bf16.msra.mxu0 0
    %286 = vmatprep.subr.bf16.mxu0 0
    %287 = vmatpush1.bf16.msra.mxu0 0
    %288 = vmatprep.subr.bf16.mxu0 0
    %289 = vmatpush1.bf16.msra.mxu0 0
    %290 = vmatprep.subr.bf16.mxu0 0
    %291 = vmatpush1.bf16.msra.mxu0 0
    %292 = vmatprep.subr.bf16.mxu0 0
    %293 = vmatpush1.bf16.msra.mxu0 0
    %294 = vmatprep.subr.bf16.mxu0 0
    %295 = vmatpush1.bf16.msra.mxu0 0
    %296 = vmatprep.subr.bf16.mxu0 0
    %297 = vmatpush1.bf16.msra.mxu0 0
    %298 = vmatprep.subr.bf16.mxu0 0
    %299 = vmatpush1.bf16.msra.mxu0 0
    %300 = vmatprep.subr.bf16.mxu0 0
    %301 = vmatpush1.bf16.msra.mxu0 0
    %302 = vmatprep.subr.bf16.mxu0 0
    %303 = vmatpush1.bf16.msra.mxu0 0
    %304 = vmatprep.subr.bf16.mxu0 0
    %305 = vmatpush1.bf16.msra.mxu0 0
    %306 = vmatprep.subr.bf16.mxu0 0
    %307 = vmatpush1.bf16.msra.mxu0 0
    %308 = vmatprep.subr.bf16.mxu0 0
    %309 = vmatpush1.bf16.msra.mxu0 0
    %310 = vmatprep.mubr.bf16.mxu0 0
    %311 = vmatmul.mubr.bf16.gmra.mrb[0].mxu0 %v276
    %v312 = vpop.f32.mrb[0].mxu0
    %v313 = vadd.f32 0.0, %v312
    %v314 = vpop.f32.mrb[0].mxu0
    %v315 = vpop.f32.mrb[0].mxu0
    %v316 = vadd.f32 0.0, %v315
    %v317 = vpop.f32.mrb[0].mxu0
    %318 = vdwg.mxu0
    %v319 = vmul.f32 %v187, 0.17677669
    %v320 = vmul.f32 %v190, 0.17677669
    %v321 = vld [vmem:[#allocation9] sm:$0x3]
    %v322 = vld [vmem:[#allocation9 + $0x2] sm:$0x3]
    %v323 = vunpack.c.0.s8 %v321
    %v324 = vunpack.c.0.s8 %v322
    %vm325 = vcmp.eq.s32.totalorder %v323, 0
    %vm326 = vcmp.eq.s32.totalorder %v324, 0
    %v327 = vpack.c.bf16 %v320, %v319
    %v329 = vunpack.c.l.b16 %v327
    %v330 = vunpack.c.h.b16 %v327
    %v331 = vpack.c.b16 %v329, %v329
    %v332 = vpack.c.b16 %v330, %v330
    %v333 = vpack.c.bf16 %v253, %v250
    %v335 = vunpack.c.l.b16 %v333
    %v336 = vunpack.c.h.b16 %v333
    %v337 = vpack.c.b16 %v335, %v335
    %v338 = vpack.c.b16 %v336, %v336
    %v339 = vpack.c.bf16 %v316, %v313
    %v341 = vunpack.c.l.b16 %v339
    %v342 = vunpack.c.h.b16 %v339
    %v343 = vpack.c.b16 %v341, %v341
    %v344 = vpack.c.b16 %v342, %v342
    %vm345 = vcmask 64512
    %v347 = vsel %vm345, %v331, 0
    %v350 = vsel %vm345, %v337, 0
    %352 = vmatprep.subr.bf16.mxu0 0
    %353 = vmatpush1.bf16.xpose.msra.mxu0 %v350
    %354 = vmatprep.subr.bf16.mxu0 0
    %355 = vmatpush1.bf16.xpose.msra.mxu0 0
    %356 = vmatprep.subr.bf16.mxu0 0
    %357 = vmatpush1.bf16.xpose.msra.mxu0 0
    %358 = vmatprep.subr.bf16.mxu0 0
    %359 = vmatpush1.bf16.xpose.msra.mxu0 0
    %360 = vmatprep.subr.bf16.mxu0 0
    %361 = vmatpush1.bf16.xpose.msra.mxu0 0
    %362 = vmatprep.subr.bf16.mxu0 0
    %363 = vmatpush1.bf16.xpose.msra.mxu0 0
    %364 = vmatprep.subr.bf16.mxu0 0
    %365 = vmatpush1.bf16.xpose.msra.mxu0 0
    %366 = vmatprep.subr.bf16.mxu0 0
    %367 = vmatpush1.bf16.xpose.msra.mxu0 0
    %368 = vmatprep.subr.bf16.mxu0 0
    %369 = vmatpush1.bf16.xpose.msra.mxu0 0
    %370 = vmatprep.subr.bf16.mxu0 0
    %371 = vmatpush1.bf16.xpose.msra.mxu0 0
    %372 = vmatprep.subr.bf16.mxu0 0
    %373 = vmatpush1.bf16.xpose.msra.mxu0 0
    %374 = vmatprep.subr.bf16.mxu0 0
    %375 = vmatpush1.bf16.xpose.msra.mxu0 0
    %376 = vmatprep.subr.bf16.mxu0 0
    %377 = vmatpush1.bf16.xpose.msra.mxu0 0
    %378 = vmatprep.subr.bf16.mxu0 0
    %379 = vmatpush1.bf16.xpose.msra.mxu0 0
    %380 = vmatprep.subr.bf16.mxu0 0
    %381 = vmatpush1.bf16.xpose.msra.mxu0 0
    %382 = vmatprep.subr.bf16.mxu0 0
    %383 = vmatpush1.bf16.xpose.msra.mxu0 0
    %384 = vmatprep.mubr.bf16.mxu0 0
    %385 = vmatmul.mubr.bf16.gmra.mrb[0].mxu0 %v347
    %v386 = vpop.f32.mrb[0].mxu0
    %v387 = vadd.f32 0.0, %v386
    %v388 = vpop.f32.mrb[0].mxu0
    %v389 = vpop.f32.mrb[0].mxu0
    %v390 = vpop.f32.mrb[0].mxu0
    %391 = vdwg.mxu0
    %v393 = vsel %vm345, %v332, 0
    %v396 = vsel %vm345, %v338, 0
    %398 = vmatprep.subr.bf16.mxu0 0
    %399 = vmatpush1.bf16.xpose.msra.mxu0 %v396
    %400 = vmatprep.subr.bf16.mxu0 0
    %401 = vmatpush1.bf16.xpose.msra.mxu0 0
    %402 = vmatprep.subr.bf16.mxu0 0
    %403 = vmatpush1.bf16.xpose.msra.mxu0 0
    %404 = vmatprep.subr.bf16.mxu0 0
    %405 = vmatpush1.bf16.xpose.msra.mxu0 0
    %406 = vmatprep.subr.bf16.mxu0 0
    %407 = vmatpush1.bf16.xpose.msra.mxu0 0
    %408 = vmatprep.subr.bf16.mxu0 0
    %409 = vmatpush1.bf16.xpose.msra.mxu0 0
    %410 = vmatprep.subr.bf16.mxu0 0
    %411 = vmatpush1.bf16.xpose.msra.mxu0 0
    %412 = vmatprep.subr.bf16.mxu0 0
    %413 = vmatpush1.bf16.xpose.msra.mxu0 0
    %414 = vmatprep.subr.bf16.mxu0 0
    %415 = vmatpush1.bf16.xpose.msra.mxu0 0
    %416 = vmatprep.subr.bf16.mxu0 0
    %417 = vmatpush1.bf16.xpose.msra.mxu0 0
    %418 = vmatprep.subr.bf16.mxu0 0
    %419 = vmatpush1.bf16.xpose.msra.mxu0 0
    %420 = vmatprep.subr.bf16.mxu0 0
    %421 = vmatpush1.bf16.xpose.msra.mxu0 0
    %422 = vmatprep.subr.bf16.mxu0 0
    %423 = vmatpush1.bf16.xpose.msra.mxu0 0
    %424 = vmatprep.subr.bf16.mxu0 0
    %425 = vmatpush1.bf16.xpose.msra.mxu0 0
    %426 = vmatprep.subr.bf16.mxu0 0
    %427 = vmatpush1.bf16.xpose.msra.mxu0 0
    %428 = vmatprep.subr.bf16.mxu0 0
    %429 = vmatpush1.bf16.xpose.msra.mxu0 0
    %430 = vmatprep.mubr.bf16.mxu0 0
    %431 = vmatmul.mubr.bf16.gmra.mrb[0].mxu0 %v393
    %v432 = vpop.f32.mrb[0].mxu0
    %v433 = vadd.f32 0.0, %v432
    %v434 = vpop.f32.mrb[0].mxu0
    %v435 = vpop.f32.mrb[0].mxu0
    %v436 = vpop.f32.mrb[0].mxu0
    %437 = vdwg.mxu0
    %v438 = vsel %vm325, -1e+20, %v387
    %v439 = vsel %vm326, -1e+20, %v433
    %v440 = vsel %vm345, %v438, -inf
    %441 = vmax.xlane.f32.xlu0 %v440
    %v442 = vpop.xlane.xlu0 %441
    %v443 = vsel %vm345, %v439, -inf
    %444 = vmax.xlane.f32.xlu0 %v443
    %v445 = vpop.xlane.xlu0 %444
    %v446 = vsub.f32 %v438, %v442
    %v447 = vsub.f32 %v439, %v445
    %v448 = vmul.f32 %v446, 1.442695
    %v449 = vpow.pop %v448
    %v450 = vmul.f32 %v447, 1.442695
    %v451 = vpow.pop %v450
    %v452 = vsel %vm345, %v449, 0.0
    %453 = vadd.xlane.f32.xlu0 %v452
    %v454 = vpop.xlane.xlu0 %453
    %v455 = vsel %vm345, %v451, 0.0
    %456 = vadd.xlane.f32.xlu0 %v455
    %v457 = vpop.xlane.xlu0 %456
    %v458 = vrcp.pop %v454
    %v459 = vrcp.pop %v457
    %v460 = vmul.f32 %v449, %v458
    %v461 = vmul.f32 %v451, %v459
    %v462 = vpack.c.bf16 %v460, %v460
    %v463 = vpack.c.bf16 %v461, %v461
    %v465 = vsel %vm345, %v462, 0
    %vm467 = vcmask 1043456
    %v469 = vsel %vm467, %v343, 0
    %471 = vmatprep.subr.bf16.mxu0 0
    %472 = vmatpush1.bf16.msra.mxu0 %v469
    %473 = vmatprep.subr.bf16.mxu0 0
    %474 = vmatpush1.bf16.msra.mxu0 0
    %475 = vmatprep.subr.bf16.mxu0 0
    %476 = vmatpush1.bf16.msra.mxu0 0
    %477 = vmatprep.subr.bf16.mxu0 0
    %478 = vmatpush1.bf16.msra.mxu0 0
    %479 = vmatprep.subr.bf16.mxu0 0
    %480 = vmatpush1.bf16.msra.mxu0 0
    %481 = vmatprep.subr.bf16.mxu0 0
    %482 = vmatpush1.bf16.msra.mxu0 0
    %483 = vmatprep.subr.bf16.mxu0 0
    %484 = vmatpush1.bf16.msra.mxu0 0
    %485 = vmatprep.subr.bf16.mxu0 0
    %486 = vmatpush1.bf16.msra.mxu0 0
    %487 = vmatprep.subr.bf16.mxu0 0
    %488 = vmatpush1.bf16.msra.mxu0 0
    %489 = vmatprep.subr.bf16.mxu0 0
    %490 = vmatpush1.bf16.msra.mxu0 0
    %491 = vmatprep.subr.bf16.mxu0 0
    %492 = vmatpush1.bf16.msra.mxu0 0
    %493 = vmatprep.subr.bf16.mxu0 0
    %494 = vmatpush1.bf16.msra.mxu0 0
    %495 = vmatprep.subr.bf16.mxu0 0
    %496 = vmatpush1.bf16.msra.mxu0 0
    %497 = vmatprep.subr.bf16.mxu0 0
    %498 = vmatpush1.bf16.msra.mxu0 0
    %499 = vmatprep.subr.bf16.mxu0 0
    %500 = vmatpush1.bf16.msra.mxu0 0
    %501 = vmatprep.subr.bf16.mxu0 0
    %502 = vmatpush1.bf16.msra.mxu0 0
    %503 = vmatprep.mubr.bf16.mxu0 0
    %504 = vmatmul.mubr.bf16.gmra.mrb[0].mxu0 %v465
    %v505 = vpop.f32.mrb[0].mxu0
    %v506 = vadd.f32 0.0, %v505
    %v507 = vpop.f32.mrb[0].mxu0
    %v508 = vpop.f32.mrb[0].mxu0
    %v509 = vpop.f32.mrb[0].mxu0
    %510 = vdwg.mxu0
    %v512 = vsel %vm345, %v463, 0
    %v515 = vsel %vm467, %v344, 0
    %517 = vmatprep.subr.bf16.mxu0 0
    %518 = vmatpush1.bf16.msra.mxu0 %v515
    %519 = vmatprep.subr.bf16.mxu0 0
    %520 = vmatpush1.bf16.msra.mxu0 0
    %521 = vmatprep.subr.bf16.mxu0 0
    %522 = vmatpush1.bf16.msra.mxu0 0
    %523 = vmatprep.subr.bf16.mxu0 0
    %524 = vmatpush1.bf16.msra.mxu0 0
    %525 = vmatprep.subr.bf16.mxu0 0
    %526 = vmatpush1.bf16.msra.mxu0 0
    %527 = vmatprep.subr.bf16.mxu0 0
    %528 = vmatpush1.bf16.msra.mxu0 0
    %529 = vmatprep.subr.bf16.mxu0 0
    %530 = vmatpush1.bf16.msra.mxu0 0
    %531 = vmatprep.subr.bf16.mxu0 0
    %532 = vmatpush1.bf16.msra.mxu0 0
    %533 = vmatprep.subr.bf16.mxu0 0
    %534 = vmatpush1.bf16.msra.mxu0 0
    %535 = vmatprep.subr.bf16.mxu0 0
    %536 = vmatpush1.bf16.msra.mxu0 0
    %537 = vmatprep.subr.bf16.mxu0 0
    %538 = vmatpush1.bf16.msra.mxu0 0
    %539 = vmatprep.subr.bf16.mxu0 0
    %540 = vmatpush1.bf16.msra.mxu0 0
    %541 = vmatprep.subr.bf16.mxu0 0
    %542 = vmatpush1.bf16.msra.mxu0 0
    %543 = vmatprep.subr.bf16.mxu0 0
    %544 = vmatpush1.bf16.msra.mxu0 0
    %545 = vmatprep.subr.bf16.mxu0 0
    %546 = vmatpush1.bf16.msra.mxu0 0
    %547 = vmatprep.subr.bf16.mxu0 0
    %548 = vmatpush1.bf16.msra.mxu0 0
    %549 = vmatprep.mubr.bf16.mxu0 0
    %550 = vmatmul.mubr.bf16.gmra.mrb[0].mxu0 %v512
    %v551 = vpop.f32.mrb[0].mxu0
    %v552 = vadd.f32 0.0, %v551
    %v553 = vpop.f32.mrb[0].mxu0
    %v554 = vpop.f32.mrb[0].mxu0
    %v555 = vpop.f32.mrb[0].mxu0
    %556 = vdwg.mxu0
    %557 = vst.msk [vmem:[#allocation2] sm:$0xff] %vm345, %v506
    %558 = vst.msk [vmem:[#allocation2 + $0x8] sm:$0xff] %vm345, %v552
    %559 = vrot.lane.b32.xlu0 %v331, 120
    %v560 = vpop.permute.xlu0 %559
    %561 = vrot.lane.b32.xlu0 %v337, 120
    %v562 = vpop.permute.xlu0 %561
    %v564 = vsel %vm345, %v560, 0
    %v567 = vsel %vm345, %v562, 0
    %569 = vmatprep.subr.bf16.mxu0 0
    %570 = vmatpush1.bf16.xpose.msra.mxu0 %v567
    %571 = vmatprep.subr.bf16.mxu0 0
    %572 = vmatpush1.bf16.xpose.msra.mxu0 0
    %573 = vmatprep.subr.bf16.mxu0 0
    %574 = vmatpush1.bf16.xpose.msra.mxu0 0
    %575 = vmatprep.subr.bf16.mxu0 0
    %576 = vmatpush1.bf16.xpose.msra.mxu0 0
    %577 = vmatprep.subr.bf16.mxu0 0
    %578 = vmatpush1.bf16.xpose.msra.mxu0 0
    %579 = vmatprep.subr.bf16.mxu0 0
    %580 = vmatpush1.bf16.xpose.msra.mxu0 0
    %581 = vmatprep.subr.bf16.mxu0 0
    %582 = vmatpush1.bf16.xpose.msra.mxu0 0
    %583 = vmatprep.subr.bf16.mxu0 0
    %584 = vmatpush1.bf16.xpose.msra.mxu0 0
    %585 = vmatprep.subr.bf16.mxu0 0
    %586 = vmatpush1.bf16.xpose.msra.mxu0 0
    %587 = vmatprep.subr.bf16.mxu0 0
    %588 = vmatpush1.bf16.xpose.msra.mxu0 0
    %589 = vmatprep.subr.bf16.mxu0 0
    %590 = vmatpush1.bf16.xpose.msra.mxu0 0
    %591 = vmatprep.subr.bf16.mxu0 0
    %592 = vmatpush1.bf16.xpose.msra.mxu0 0
    %593 = vmatprep.subr.bf16.mxu0 0
    %594 = vmatpush1.bf16.xpose.msra.mxu0 0
    %595 = vmatprep.subr.bf16.mxu0 0
    %596 = vmatpush1.bf16.xpose.msra.mxu0 0
    %597 = vmatprep.subr.bf16.mxu0 0
    %598 = vmatpush1.bf16.xpose.msra.mxu0 0
    %599 = vmatprep.subr.bf16.mxu0 0
    %600 = vmatpush1.bf16.xpose.msra.mxu0 0
    %601 = vmatprep.mubr.bf16.mxu0 0
    %602 = vmatmul.mubr.bf16.gmra.mrb[0].mxu0 %v564
    %v603 = vpop.f32.mrb[0].mxu0
    %v604 = vadd.f32 0.0, %v603
    %v605 = vpop.f32.mrb[0].mxu0
    %v606 = vpop.f32.mrb[0].mxu0
    %v607 = vpop.f32.mrb[0].mxu0
    %608 = vdwg.mxu0
    %609 = vrot.lane.b32.xlu0 %v332, 120
    %v610 = vpop.permute.xlu0 %609
    %611 = vrot.lane.b32.xlu0 %v338, 120
    %v612 = vpop.permute.xlu0 %611
    %v614 = vsel %vm345, %v610, 0
    %v617 = vsel %vm345, %v612, 0
    %619 = vmatprep.subr.bf16.mxu0 0
    %620 = vmatpush1.bf16.xpose.msra.mxu0 %v617
    %621 = vmatprep.subr.bf16.mxu0 0
    %622 = vmatpush1.bf16.xpose.msra.mxu0 0
    %623 = vmatprep.subr.bf16.mxu0 0
    %624 = vmatpush1.bf16.xpose.msra.mxu0 0
    %625 = vmatprep.subr.bf16.mxu0 0
    %626 = vmatpush1.bf16.xpose.msra.mxu0 0
    %627 = vmatprep.subr.bf16.mxu0 0
    %628 = vmatpush1.bf16.xpose.msra.mxu0 0
    %629 = vmatprep.subr.bf16.mxu0 0
    %630 = vmatpush1.bf16.xpose.msra.mxu0 0
    %631 = vmatprep.subr.bf16.mxu0 0
    %632 = vmatpush1.bf16.xpose.msra.mxu0 0
    %633 = vmatprep.subr.bf16.mxu0 0
    %634 = vmatpush1.bf16.xpose.msra.mxu0 0
    %635 = vmatprep.subr.bf16.mxu0 0
    %636 = vmatpush1.bf16.xpose.msra.mxu0 0
    %637 = vmatprep.subr.bf16.mxu0 0
    %638 = vmatpush1.bf16.xpose.msra.mxu0 0
    %639 = vmatprep.subr.bf16.mxu0 0
    %640 = vmatpush1.bf16.xpose.msra.mxu0 0
    %641 = vmatprep.subr.bf16.mxu0 0
    %642 = vmatpush1.bf16.xpose.msra.mxu0 0
    %643 = vmatprep.subr.bf16.mxu0 0
    %644 = vmatpush1.bf16.xpose.msra.mxu0 0
    %645 = vmatprep.subr.bf16.mxu0 0
    %646 = vmatpush1.bf16.xpose.msra.mxu0 0
    %647 = vmatprep.subr.bf16.mxu0 0
    %648 = vmatpush1.bf16.xpose.msra.mxu0 0
    %649 = vmatprep.subr.bf16.mxu0 0
    %650 = vmatpush1.bf16.xpose.msra.mxu0 0
    %651 = vmatprep.mubr.bf16.mxu0 0
    %652 = vmatmul.mubr.bf16.gmra.mrb[0].mxu0 %v614
    %v653 = vpop.f32.mrb[0].mxu0
    %v654 = vadd.f32 0.0, %v653
    %v655 = vpop.f32.mrb[0].mxu0
    %v656 = vpop.f32.mrb[0].mxu0
    %v657 = vpop.f32.mrb[0].mxu0
    %658 = vdwg.mxu0
    %v659 = vsel %vm325, -1e+20, %v604
    %v660 = vsel %vm326, -1e+20, %v654
    %v661 = vsel %vm345, %v659, -inf
    %662 = vmax.xlane.f32.xlu0 %v661
    %v663 = vpop.xlane.xlu0 %662
    %v664 = vsel %vm345, %v660, -inf
    %665 = vmax.xlane.f32.xlu0 %v664
    %v666 = vpop.xlane.xlu0 %665
    %v667 = vsub.f32 %v659, %v663
    %v668 = vsub.f32 %v660, %v666
    %v669 = vmul.f32 %v667, 1.442695
    %v670 = vpow.pop %v669
    %v671 = vmul.f32 %v668, 1.442695
    %v672 = vpow.pop %v671
    %v673 = vsel %vm345, %v670, 0.0
    %674 = vadd.xlane.f32.xlu0 %v673
    %v675 = vpop.xlane.xlu0 %674
    %v676 = vsel %vm345, %v672, 0.0
    %677 = vadd.xlane.f32.xlu0 %v676
    %v678 = vpop.xlane.xlu0 %677
    %v679 = vrcp.pop %v675
    %v680 = vrcp.pop %v678
    %v681 = vmul.f32 %v670, %v679
    %v682 = vmul.f32 %v672, %v680
    %v683 = vpack.c.bf16 %v681, %v681
    %v684 = vpack.c.bf16 %v682, %v682
    %685 = vrot.lane.b32.xlu0 %v343, 120
    %v686 = vpop.permute.xlu0 %685
    %v688 = vsel %vm345, %v683, 0
    %v691 = vsel %vm467, %v686, 0
    %693 = vmatprep.subr.bf16.mxu0 0
    %694 = vmatpush1.bf16.msra.mxu0 %v691
    %695 = vmatprep.subr.bf16.mxu0 0
    %696 = vmatpush1.bf16.msra.mxu0 0
    %697 = vmatprep.subr.bf16.mxu0 0
    %698 = vmatpush1.bf16.msra.mxu0 0
    %699 = vmatprep.subr.bf16.mxu0 0
    %700 = vmatpush1.bf16.msra.mxu0 0
    %701 = vmatprep.subr.bf16.mxu0 0
    %702 = vmatpush1.bf16.msra.mxu0 0
    %703 = vmatprep.subr.bf16.mxu0 0
    %704 = vmatpush1.bf16.msra.mxu0 0
    %705 = vmatprep.subr.bf16.mxu0 0
    %706 = vmatpush1.bf16.msra.mxu0 0
    %707 = vmatprep.subr.bf16.mxu0 0
    %708 = vmatpush1.bf16.msra.mxu0 0
    %709 = vmatprep.subr.bf16.mxu0 0
    %710 = vmatpush1.bf16.msra.mxu0 0
    %711 = vmatprep.subr.bf16.mxu0 0
    %712 = vmatpush1.bf16.msra.mxu0 0
    %713 = vmatprep.subr.bf16.mxu0 0
    %714 = vmatpush1.bf16.msra.mxu0 0
    %715 = vmatprep.subr.bf16.mxu0 0
    %716 = vmatpush1.bf16.msra.mxu0 0
    %717 = vmatprep.subr.bf16.mxu0 0
    %718 = vmatpush1.bf16.msra.mxu0 0
    %719 = vmatprep.subr.bf16.mxu0 0
    %720 = vmatpush1.bf16.msra.mxu0 0
    %721 = vmatprep.subr.bf16.mxu0 0
    %722 = vmatpush1.bf16.msra.mxu0 0
    %723 = vmatprep.subr.bf16.mxu0 0
    %724 = vmatpush1.bf16.msra.mxu0 0
    %725 = vmatprep.mubr.bf16.mxu0 0
    %726 = vmatmul.mubr.bf16.gmra.mrb[0].mxu0 %v688
    %v727 = vpop.f32.mrb[0].mxu0
    %v728 = vadd.f32 0.0, %v727
    %v729 = vpop.f32.mrb[0].mxu0
    %v730 = vpop.f32.mrb[0].mxu0
    %v731 = vpop.f32.mrb[0].mxu0
    %732 = vdwg.mxu0
    %733 = vrot.lane.b32.xlu0 %v344, 120
    %v734 = vpop.permute.xlu0 %733
    %v736 = vsel %vm345, %v684, 0
    %v739 = vsel %vm467, %v734, 0
    %741 = vmatprep.subr.bf16.mxu0 0
    %742 = vmatpush1.bf16.msra.mxu0 %v739
    %743 = vmatprep.subr.bf16.mxu0 0
    %744 = vmatpush1.bf16.msra.mxu0 0
    %745 = vmatprep.subr.bf16.mxu0 0
    %746 = vmatpush1.bf16.msra.mxu0 0
    %747 = vmatprep.subr.bf16.mxu0 0
    %748 = vmatpush1.bf16.msra.mxu0 0
    %749 = vmatprep.subr.bf16.mxu0 0
    %750 = vmatpush1.bf16.msra.mxu0 0
    %751 = vmatprep.subr.bf16.mxu0 0
    %752 = vmatpush1.bf16.msra.mxu0 0
    %753 = vmatprep.subr.bf16.mxu0 0
    %754 = vmatpush1.bf16.msra.mxu0 0
    %755 = vmatprep.subr.bf16.mxu0 0
    %756 = vmatpush1.bf16.msra.mxu0 0
    %757 = vmatprep.subr.bf16.mxu0 0
    %758 = vmatpush1.bf16.msra.mxu0 0
    %759 = vmatprep.subr.bf16.mxu0 0
    %760 = vmatpush1.bf16.msra.mxu0 0
    %761 = vmatprep.subr.bf16.mxu0 0
    %762 = vmatpush1.bf16.msra.mxu0 0
    %763 = vmatprep.subr.bf16.mxu0 0
    %764 = vmatpush1.bf16.msra.mxu0 0
    %765 = vmatprep.subr.bf16.mxu0 0
    %766 = vmatpush1.bf16.msra.mxu0 0
    %767 = vmatprep.subr.bf16.mxu0 0
    %768 = vmatpush1.bf16.msra.mxu0 0
    %769 = vmatprep.subr.bf16.mxu0 0
    %770 = vmatpush1.bf16.msra.mxu0 0
    %771 = vmatprep.subr.bf16.mxu0 0
    %772 = vmatpush1.bf16.msra.mxu0 0
    %773 = vmatprep.mubr.bf16.mxu0 0
    %774 = vmatmul.mubr.bf16.gmra.mrb[0].mxu0 %v736
    %v775 = vpop.f32.mrb[0].mxu0
    %v776 = vadd.f32 0.0, %v775
    %v777 = vpop.f32.mrb[0].mxu0
    %v778 = vpop.f32.mrb[0].mxu0
    %v779 = vpop.f32.mrb[0].mxu0
    %780 = vdwg.mxu0
    %783 = vrot.lane.b32.xlu0 %v728, 8
    %v784 = vpop.permute.xlu0 %783
    %785 = vrot.lane.b32.xlu0 %v776, 8
    %v786 = vpop.permute.xlu0 %785
    %vm789 = vcmask 130112
    %790 = vst.msk [vmem:[#allocation2] sm:$0xff] %vm789, %v784
    %791 = vst.msk [vmem:[#allocation2 + $0x8] sm:$0xff] %vm789, %v786
    %792 = vrot.lane.b32.xlu0 %v331, 112
    %v793 = vpop.permute.xlu0 %792
    %794 = vrot.lane.b32.xlu0 %v337, 112
    %v795 = vpop.permute.xlu0 %794
    %v797 = vsel %vm345, %v793, 0
    %v800 = vsel %vm345, %v795, 0
    %802 = vmatprep.subr.bf16.mxu0 0
    %803 = vmatpush1.bf16.xpose.msra.mxu0 %v800
    %804 = vmatprep.subr.bf16.mxu0 0
    %805 = vmatpush1.bf16.xpose.msra.mxu0 0
    %806 = vmatprep.subr.bf16.mxu0 0
    %807 = vmatpush1.bf16.xpose.msra.mxu0 0
    %808 = vmatprep.subr.bf16.mxu0 0
    %809 = vmatpush1.bf16.xpose.msra.mxu0 0
    %810 = vmatprep.subr.bf16.mxu0 0
    %811 = vmatpush1.bf16.xpose.msra.mxu0 0
    %812 = vmatprep.subr.bf16.mxu0 0
    %813 = vmatpush1.bf16.xpose.msra.mxu0 0
    %814 = vmatprep.subr.bf16.mxu0 0
    %815 = vmatpush1.bf16.xpose.msra.mxu0 0
    %816 = vmatprep.subr.bf16.mxu0 0
    %817 = vmatpush1.bf16.xpose.msra.mxu0 0
    %818 = vmatprep.subr.bf16.mxu0 0
    %819 = vmatpush1.bf16.xpose.msra.mxu0 0
    %820 = vmatprep.subr.bf16.mxu0 0
    %821 = vmatpush1.bf16.xpose.msra.mxu0 0
    %822 = vmatprep.subr.bf16.mxu0 0
    %823 = vmatpush1.bf16.xpose.msra.mxu0 0
    %824 = vmatprep.subr.bf16.mxu0 0
    %825 = vmatpush1.bf16.xpose.msra.mxu0 0
    %826 = vmatprep.subr.bf16.mxu0 0
    %827 = vmatpush1.bf16.xpose.msra.mxu0 0
    %828 = vmatprep.subr.bf16.mxu0 0
    %829 = vmatpush1.bf16.xpose.msra.mxu0 0
    %830 = vmatprep.subr.bf16.mxu0 0
    %831 = vmatpush1.bf16.xpose.msra.mxu0 0
    %832 = vmatprep.subr.bf16.mxu0 0
    %833 = vmatpush1.bf16.xpose.msra.mxu0 0
    %834 = vmatprep.mubr.bf16.mxu0 0
    %835 = vmatmul.mubr.bf16.gmra.mrb[0].mxu0 %v797
    %v836 = vpop.f32.mrb[0].mxu0
    %v837 = vadd.f32 0.0, %v836
    %v838 = vpop.f32.mrb[0].mxu0
    %v839 = vpop.f32.mrb[0].mxu0
    %v840 = vpop.f32.mrb[0].mxu0
    %841 = vdwg.mxu0
    %842 = vrot.lane.b32.xlu0 %v332, 112
    %v843 = vpop.permute.xlu0 %842
    %844 = vrot.lane.b32.xlu0 %v338, 112
    %v845 = vpop.permute.xlu0 %844
    %v847 = vsel %vm345, %v843, 0
    %v850 = vsel %vm345, %v845, 0
    %852 = vmatprep.subr.bf16.mxu0 0
    %853 = vmatpush1.bf16.xpose.msra.mxu0 %v850
    %854 = vmatprep.subr.bf16.mxu0 0
    %855 = vmatpush1.bf16.xpose.msra.mxu0 0
    %856 = vmatprep.subr.bf16.mxu0 0
    %857 = vmatpush1.bf16.xpose.msra.mxu0 0
    %858 = vmatprep.subr.bf16.mxu0 0
    %859 = vmatpush1.bf16.xpose.msra.mxu0 0
    %860 = vmatprep.subr.bf16.mxu0 0
    %861 = vmatpush1.bf16.xpose.msra.mxu0 0
    %862 = vmatprep.subr.bf16.mxu0 0
    %863 = vmatpush1.bf16.xpose.msra.mxu0 0
    %864 = vmatprep.subr.bf16.mxu0 0
    %865 = vmatpush1.bf16.xpose.msra.mxu0 0
    %866 = vmatprep.subr.bf16.mxu0 0
    %867 = vmatpush1.bf16.xpose.msra.mxu0 0
    %868 = vmatprep.subr.bf16.mxu0 0
    %869 = vmatpush1.bf16.xpose.msra.mxu0 0
    %870 = vmatprep.subr.bf16.mxu0 0
    %871 = vmatpush1.bf16.xpose.msra.mxu0 0
    %872 = vmatprep.subr.bf16.mxu0 0
    %873 = vmatpush1.bf16.xpose.msra.mxu0 0
    %874 = vmatprep.subr.bf16.mxu0 0
    %875 = vmatpush1.bf16.xpose.msra.mxu0 0
    %876 = vmatprep.subr.bf16.mxu0 0
    %877 = vmatpush1.bf16.xpose.msra.mxu0 0
    %878 = vmatprep.subr.bf16.mxu0 0
    %879 = vmatpush1.bf16.xpose.msra.mxu0 0
    %880 = vmatprep.subr.bf16.mxu0 0
    %881 = vmatpush1.bf16.xpose.msra.mxu0 0
    %882 = vmatprep.subr.bf16.mxu0 0
    %883 = vmatpush1.bf16.xpose.msra.mxu0 0
    %884 = vmatprep.mubr.bf16.mxu0 0
    %885 = vmatmul.mubr.bf16.gmra.mrb[0].mxu0 %v847
    %v886 = vpop.f32.mrb[0].mxu0
    %v887 = vadd.f32 0.0, %v886
    %v888 = vpop.f32.mrb[0].mxu0
    %v889 = vpop.f32.mrb[0].mxu0
    %v890 = vpop.f32.mrb[0].mxu0
    %891 = vdwg.mxu0
    %v892 = vsel %vm325, -1e+20, %v837
    %v893 = vsel %vm326, -1e+20, %v887
    %v894 = vsel %vm345, %v892, -inf
    %895 = vmax.xlane.f32.xlu0 %v894
    %v896 = vpop.xlane.xlu0 %895
    %v897 = vsel %vm345, %v893, -inf
    %898 = vmax.xlane.f32.xlu0 %v897
    %v899 = vpop.xlane.xlu0 %898
    %v900 = vsub.f32 %v892, %v896
    %v901 = vsub.f32 %v893, %v899
    %v902 = vmul.f32 %v900, 1.442695
    %v903 = vpow.pop %v902
    %v904 = vmul.f32 %v901, 1.442695
    %v905 = vpow.pop %v904
    %v906 = vsel %vm345, %v903, 0.0
    %907 = vadd.xlane.f32.xlu0 %v906
    %v908 = vpop.xlane.xlu0 %907
    %v909 = vsel %vm345, %v905, 0.0
    %910 = vadd.xlane.f32.xlu0 %v909
    %v911 = vpop.xlane.xlu0 %910
    %v912 = vrcp.pop %v908
    %v913 = vrcp.pop %v911
    %v914 = vmul.f32 %v903, %v912
    %v915 = vmul.f32 %v905, %v913
    %v916 = vpack.c.bf16 %v914, %v914
    %v917 = vpack.c.bf16 %v915, %v915
    %918 = vrot.lane.b32.xlu0 %v343, 112
    %v919 = vpop.permute.xlu0 %918
    %v921 = vsel %vm345, %v916, 0
    %v924 = vsel %vm467, %v919, 0
    %926 = vmatprep.subr.bf16.mxu0 0
    %927 = vmatpush1.bf16.msra.mxu0 %v924
    %928 = vmatprep.subr.bf16.mxu0 0
    %929 = vmatpush1.bf16.msra.mxu0 0
    %930 = vmatprep.subr.bf16.mxu0 0
    %931 = vmatpush1.bf16.msra.mxu0 0
    %932 = vmatprep.subr.bf16.mxu0 0
    %933 = vmatpush1.bf16.msra.mxu0 0
    %934 = vmatprep.subr.bf16.mxu0 0
    %935 = vmatpush1.bf16.msra.mxu0 0
    %936 = vmatprep.subr.bf16.mxu0 0
    %937 = vmatpush1.bf16.msra.mxu0 0
    %938 = vmatprep.subr.bf16.mxu0 0
    %939 = vmatpush1.bf16.msra.mxu0 0
    %940 = vmatprep.subr.bf16.mxu0 0
    %941 = vmatpush1.bf16.msra.mxu0 0
    %942 = vmatprep.subr.bf16.mxu0 0
    %943 = vmatpush1.bf16.msra.mxu0 0
    %944 = vmatprep.subr.bf16.mxu0 0
    %945 = vmatpush1.bf16.msra.mxu0 0
    %946 = vmatprep.subr.bf16.mxu0 0
    %947 = vmatpush1.bf16.msra.mxu0 0
    %948 = vmatprep.subr.bf16.mxu0 0
    %949 = vmatpush1.bf16.msra.mxu0 0
    %950 = vmatprep.subr.bf16.mxu0 0
    %951 = vmatpush1.bf16.msra.mxu0 0
    %952 = vmatprep.subr.bf16.mxu0 0
    %953 = vmatpush1.bf16.msra.mxu0 0
    %954 = vmatprep.subr.bf16.mxu0 0
    %955 = vmatpush1.bf16.msra.mxu0 0
    %956 = vmatprep.subr.bf16.mxu0 0
    %957 = vmatpush1.bf16.msra.mxu0 0
    %958 = vmatprep.mubr.bf16.mxu0 0
    %959 = vmatmul.mubr.bf16.gmra.mrb[0].mxu0 %v921
    %v960 = vpop.f32.mrb[0].mxu0
    %v961 = vadd.f32 0.0, %v960
    %v962 = vpop.f32.mrb[0].mxu0
    %v963 = vpop.f32.mrb[0].mxu0
    %v964 = vpop.f32.mrb[0].mxu0
    %965 = vdwg.mxu0
    %966 = vrot.lane.b32.xlu0 %v344, 112
    %v967 = vpop.permute.xlu0 %966
    %v969 = vsel %vm345, %v917, 0
    %v972 = vsel %vm467, %v967, 0
    %974 = vmatprep.subr.bf16.mxu0 0
    %975 = vmatpush1.bf16.msra.mxu0 %v972
    %976 = vmatprep.subr.bf16.mxu0 0
    %977 = vmatpush1.bf16.msra.mxu0 0
    %978 = vmatprep.subr.bf16.mxu0 0
    %979 = vmatpush1.bf16.msra.mxu0 0
    %980 = vmatprep.subr.bf16.mxu0 0
    %981 = vmatpush1.bf16.msra.mxu0 0
    %982 = vmatprep.subr.bf16.mxu0 0
    %983 = vmatpush1.bf16.msra.mxu0 0
    %984 = vmatprep.subr.bf16.mxu0 0
    %985 = vmatpush1.bf16.msra.mxu0 0
    %986 = vmatprep.subr.bf16.mxu0 0
    %987 = vmatpush1.bf16.msra.mxu0 0
    %988 = vmatprep.subr.bf16.mxu0 0
    %989 = vmatpush1.bf16.msra.mxu0 0
    %990 = vmatprep.subr.bf16.mxu0 0
    %991 = vmatpush1.bf16.msra.mxu0 0
    %992 = vmatprep.subr.bf16.mxu0 0
    %993 = vmatpush1.bf16.msra.mxu0 0
    %994 = vmatprep.subr.bf16.mxu0 0
    %995 = vmatpush1.bf16.msra.mxu0 0
    %996 = vmatprep.subr.bf16.mxu0 0
    %997 = vmatpush1.bf16.msra.mxu0 0
    %998 = vmatprep.subr.bf16.mxu0 0
    %999 = vmatpush1.bf16.msra.mxu0 0
    %1000 = vmatprep.subr.bf16.mxu0 0
    %1001 = vmatpush1.bf16.msra.mxu0 0
    %1002 = vmatprep.subr.bf16.mxu0 0
    %1003 = vmatpush1.bf16.msra.mxu0 0
    %1004 = vmatprep.subr.bf16.mxu0 0
    %1005 = vmatpush1.bf16.msra.mxu0 0
    %1006 = vmatprep.mubr.bf16.mxu0 0
    %1007 = vmatmul.mubr.bf16.gmra.mrb[0].mxu0 %v969
    %v1008 = vpop.f32.mrb[0].mxu0
    %v1009 = vadd.f32 0.0, %v1008
    %v1010 = vpop.f32.mrb[0].mxu0
    %v1011 = vpop.f32.mrb[0].mxu0
    %v1012 = vpop.f32.mrb[0].mxu0
    %1013 = vdwg.mxu0
    %1016 = vrot.lane.b32.xlu0 %v961, 16
    %v1017 = vpop.permute.xlu0 %1016
    %1018 = vrot.lane.b32.xlu0 %v1009, 16
    %v1019 = vpop.permute.xlu0 %1018
    %vm1022 = vcmask 195712
    %1023 = vst.msk [vmem:[#allocation2] sm:$0xff] %vm1022, %v1017
    %1024 = vst.msk [vmem:[#allocation2 + $0x8] sm:$0xff] %vm1022, %v1019
    %1025 = vrot.lane.b32.xlu0 %v331, 104
    %v1026 = vpop.permute.xlu0 %1025
    %1027 = vrot.lane.b32.xlu0 %v337, 104
    %v1028 = vpop.permute.xlu0 %1027
    %v1030 = vsel %vm345, %v1026, 0
    %v1033 = vsel %vm345, %v1028, 0
    %1035 = vmatprep.subr.bf16.mxu0 0
    %1036 = vmatpush1.bf16.xpose.msra.mxu0 %v1033
    %1037 = vmatprep.subr.bf16.mxu0 0
    %1038 = vmatpush1.bf16.xpose.msra.mxu0 0
    %1039 = vmatprep.subr.bf16.mxu0 0
    %1040 = vmatpush1.bf16.xpose.msra.mxu0 0
    %1041 = vmatprep.subr.bf16.mxu0 0
    %1042 = vmatpush1.bf16.xpose.msra.mxu0 0
    %1043 = vmatprep.subr.bf16.mxu0 0
    %1044 = vmatpush1.bf16.xpose.msra.mxu0 0
    %1045 = vmatprep.subr.bf16.mxu0 0
    %1046 = vmatpush1.bf16.xpose.msra.mxu0 0
    %1047 = vmatprep.subr.bf16.mxu0 0
    %1048 = vmatpush1.bf16.xpose.msra.mxu0 0
    %1049 = vmatprep.subr.bf16.mxu0 0
    %1050 = vmatpush1.bf16.xpose.msra.mxu0 0
    %1051 = vmatprep.subr.bf16.mxu0 0
    %1052 = vmatpush1.bf16.xpose.msra.mxu0 0
    %1053 = vmatprep.subr.bf16.mxu0 0
    %1054 = vmatpush1.bf16.xpose.msra.mxu0 0
    %1055 = vmatprep.subr.bf16.mxu0 0
    %1056 = vmatpush1.bf16.xpose.msra.mxu0 0
    %1057 = vmatprep.subr.bf16.mxu0 0
    %1058 = vmatpush1.bf16.xpose.msra.mxu0 0
    %1059 = vmatprep.subr.bf16.mxu0 0
    %1060 = vmatpush1.bf16.xpose.msra.mxu0 0
    %1061 = vmatprep.subr.bf16.mxu0 0
    %1062 = vmatpush1.bf16.xpose.msra.mxu0 0
    %1063 = vmatprep.subr.bf16.mxu0 0
    %1064 = vmatpush1.bf16.xpose.msra.mxu0 0
    %1065 = vmatprep.subr.bf16.mxu0 0
    %1066 = vmatpush1.bf16.xpose.msra.mxu0 0
    %1067 = vmatprep.mubr.bf16.mxu0 0
    %1068 = vmatmul.mubr.bf16.gmra.mrb[0].mxu0 %v1030
    %v1069 = vpop.f32.mrb[0].mxu0
    %v1070 = vadd.f32 0.0, %v1069
    %v1071 = vpop.f32.mrb[0].mxu0
    %v1072 = vpop.f32.mrb[0].mxu0
    %v1073 = vpop.f32.mrb[0].mxu0
    %1074 = vdwg.mxu0
    %1075 = vrot.lane.b32.xlu0 %v332, 104
    %v1076 = vpop.permute.xlu0 %1075
    %1077 = vrot.lane.b32.xlu0 %v338, 104
    %v1078 = vpop.permute.xlu0 %1077
    %v1080 = vsel %vm345, %v1076, 0
    %v1083 = vsel %vm345, %v1078, 0
    %1085 = vmatprep.subr.bf16.mxu0 0
    %1086 = vmatpush1.bf16.xpose.msra.mxu0 %v1083
    %1087 = vmatprep.subr.bf16.mxu0 0
    %1088 = vmatpush1.bf16.xpose.msra.mxu0 0
    %1089 = vmatprep.subr.bf16.mxu0 0
    %1090 = vmatpush1.bf16.xpose.msra.mxu0 0
    %1091 = vmatprep.subr.bf16.mxu0 0
    %1092 = vmatpush1.bf16.xpose.msra.mxu0 0
    %1093 = vmatprep.subr.bf16.mxu0 0
    %1094 = vmatpush1.bf16.xpose.msra.mxu0 0
    %1095 = vmatprep.subr.bf16.mxu0 0
    %1096 = vmatpush1.bf16.xpose.msra.mxu0 0
    %1097 = vmatprep.subr.bf16.mxu0 0
    %1098 = vmatpush1.bf16.xpose.msra.mxu0 0
    %1099 = vmatprep.subr.bf16.mxu0 0
    %1100 = vmatpush1.bf16.xpose.msra.mxu0 0
    %1101 = vmatprep.subr.bf16.mxu0 0
    %1102 = vmatpush1.bf16.xpose.msra.mxu0 0
    %1103 = vmatprep.subr.bf16.mxu0 0
    %1104 = vmatpush1.bf16.xpose.msra.mxu0 0
    %1105 = vmatprep.subr.bf16.mxu0 0
    %1106 = vmatpush1.bf16.xpose.msra.mxu0 0
    %1107 = vmatprep.subr.bf16.mxu0 0
    %1108 = vmatpush1.bf16.xpose.msra.mxu0 0
    %1109 = vmatprep.subr.bf16.mxu0 0
    %1110 = vmatpush1.bf16.xpose.msra.mxu0 0
    %1111 = vmatprep.subr.bf16.mxu0 0
    %1112 = vmatpush1.bf16.xpose.msra.mxu0 0
    %1113 = vmatprep.subr.bf16.mxu0 0
    %1114 = vmatpush1.bf16.xpose.msra.mxu0 0
    %1115 = vmatprep.subr.bf16.mxu0 0
    %1116 = vmatpush1.bf16.xpose.msra.mxu0 0
    %1117 = vmatprep.mubr.bf16.mxu0 0
    %1118 = vmatmul.mubr.bf16.gmra.mrb[0].mxu0 %v1080
    %v1119 = vpop.f32.mrb[0].mxu0
    %v1120 = vadd.f32 0.0, %v1119
    %v1121 = vpop.f32.mrb[0].mxu0
    %v1122 = vpop.f32.mrb[0].mxu0
    %v1123 = vpop.f32.mrb[0].mxu0
    %1124 = vdwg.mxu0
    %v1125 = vsel %vm325, -1e+20, %v1070
    %v1126 = vsel %vm326, -1e+20, %v1120
    %v1127 = vsel %vm345, %v1125, -inf
    %1128 = vmax.xlane.f32.xlu0 %v1127
    %v1129 = vpop.xlane.xlu0 %1128
    %v1130 = vsel %vm345, %v1126, -inf
    %1131 = vmax.xlane.f32.xlu0 %v1130
    %v1132 = vpop.xlane.xlu0 %1131
    %v1133 = vsub.f32 %v1125, %v1129
    %v1134 = vsub.f32 %v1126, %v1132
    %v1135 = vmul.f32 %v1133, 1.442695
    %v1136 = vpow.pop %v1135
    %v1137 = vmul.f32 %v1134, 1.442695
    %v1138 = vpow.pop %v1137
    %v1139 = vsel %vm345, %v1136, 0.0
    %1140 = vadd.xlane.f32.xlu0 %v1139
    %v1141 = vpop.xlane.xlu0 %1140
    %v1142 = vsel %vm345, %v1138, 0.0
    %1143 = vadd.xlane.f32.xlu0 %v1142
    %v1144 = vpop.xlane.xlu0 %1143
    %v1145 = vrcp.pop %v1141
    %v1146 = vrcp.pop %v1144
    %v1147 = vmul.f32 %v1136, %v1145
    %v1148 = vmul.f32 %v1138, %v1146
    %v1149 = vpack.c.bf16 %v1147, %v1147
    %v1150 = vpack.c.bf16 %v1148, %v1148
    %1151 = vrot.lane.b32.xlu0 %v343, 104
    %v1152 = vpop.permute.xlu0 %1151
    %v1154 = vsel %vm345, %v1149, 0
    %v1157 = vsel %vm467, %v1152, 0
    %1159 = vmatprep.subr.bf16.mxu0 0
    %1160 = vmatpush1.bf16.msra.mxu0 %v1157
    %1161 = vmatprep.subr.bf16.mxu0 0
    %1162 = vmatpush1.bf16.msra.mxu0 0
    %1163 = vmatprep.subr.bf16.mxu0 0
    %1164 = vmatpush1.bf16.msra.mxu0 0
    %1165 = vmatprep.subr.bf16.mxu0 0
    %1166 = vmatpush1.bf16.msra.mxu0 0
    %1167 = vmatprep.subr.bf16.mxu0 0
    %1168 = vmatpush1.bf16.msra.mxu0 0
    %1169 = vmatprep.subr.bf16.mxu0 0
    %1170 = vmatpush1.bf16.msra.mxu0 0
    %1171 = vmatprep.subr.bf16.mxu0 0
    %1172 = vmatpush1.bf16.msra.mxu0 0
    %1173 = vmatprep.subr.bf16.mxu0 0
    %1174 = vmatpush1.bf16.msra.mxu0 0
    %1175 = vmatprep.subr.bf16.mxu0 0
    %1176 = vmatpush1.bf16.msra.mxu0 0
    %1177 = vmatprep.subr.bf16.mxu0 0
    %1178 = vmatpush1.bf16.msra.mxu0 0
    %1179 = vmatprep.subr.bf16.mxu0 0
    %1180 = vmatpush1.bf16.msra.mxu0 0
    %1181 = vmatprep.subr.bf16.mxu0 0
    %1182 = vmatpush1.bf16.msra.mxu0 0
    %1183 = vmatprep.subr.bf16.mxu0 0
    %1184 = vmatpush1.bf16.msra.mxu0 0
    %1185 = vmatprep.subr.bf16.mxu0 0
    %1186 = vmatpush1.bf16.msra.mxu0 0
    %1187 = vmatprep.subr.bf16.mxu0 0
    %1188 = vmatpush1.bf16.msra.mxu0 0
    %1189 = vmatprep.subr.bf16.mxu0 0
    %1190 = vmatpush1.bf16.msra.mxu0 0
    %1191 = vmatprep.mubr.bf16.mxu0 0
    %1192 = vmatmul.mubr.bf16.gmra.mrb[0].mxu0 %v1154
    %v1193 = vpop.f32.mrb[0].mxu0
    %v1194 = vadd.f32 0.0, %v1193
    %v1195 = vpop.f32.mrb[0].mxu0
    %v1196 = vpop.f32.mrb[0].mxu0
    %v1197 = vpop.f32.mrb[0].mxu0
    %1198 = vdwg.mxu0
    %1199 = vrot.lane.b32.xlu0 %v344, 104
    %v1200 = vpop.permute.xlu0 %1199
    %v1202 = vsel %vm345, %v1150, 0
    %v1205 = vsel %vm467, %v1200, 0
    %1207 = vmatprep.subr.bf16.mxu0 0
    %1208 = vmatpush1.bf16.msra.mxu0 %v1205
    %1209 = vmatprep.subr.bf16.mxu0 0
    %1210 = vmatpush1.bf16.msra.mxu0 0
    %1211 = vmatprep.subr.bf16.mxu0 0
    %1212 = vmatpush1.bf16.msra.mxu0 0
    %1213 = vmatprep.subr.bf16.mxu0 0
    %1214 = vmatpush1.bf16.msra.mxu0 0
    %1215 = vmatprep.subr.bf16.mxu0 0
    %1216 = vmatpush1.bf16.msra.mxu0 0
    %1217 = vmatprep.subr.bf16.mxu0 0
    %1218 = vmatpush1.bf16.msra.mxu0 0
    %1219 = vmatprep.subr.bf16.mxu0 0
    %1220 = vmatpush1.bf16.msra.mxu0 0
    %1221 = vmatprep.subr.bf16.mxu0 0
    %1222 = vmatpush1.bf16.msra.mxu0 0
    %1223 = vmatprep.subr.bf16.mxu0 0
    %1224 = vmatpush1.bf16.msra.mxu0 0
    %1225 = vmatprep.subr.bf16.mxu0 0
    %1226 = vmatpush1.bf16.msra.mxu0 0
    %1227 = vmatprep.subr.bf16.mxu0 0
    %1228 = vmatpush1.bf16.msra.mxu0 0
    %1229 = vmatprep.subr.bf16.mxu0 0
    %1230 = vmatpush1.bf16.msra.mxu0 0
    %1231 = vmatprep.subr.bf16.mxu0 0
    %1232 = vmatpush1.bf16.msra.mxu0 0
    %1233 = vmatprep.subr.bf16.mxu0 0
    %1234 = vmatpush1.bf16.msra.mxu0 0
    %1235 = vmatprep.subr.bf16.mxu0 0
    %1236 = vmatpush1.bf16.msra.mxu0 0
    %1237 = vmatprep.subr.bf16.mxu0 0
    %1238 = vmatpush1.bf16.msra.mxu0 0
    %1239 = vmatprep.mubr.bf16.mxu0 0
    %1240 = vmatmul.mubr.bf16.gmra.mrb[0].mxu0 %v1202
    %v1241 = vpop.f32.mrb[0].mxu0
    %v1242 = vadd.f32 0.0, %v1241
    %v1243 = vpop.f32.mrb[0].mxu0
    %v1244 = vpop.f32.mrb[0].mxu0
    %v1245 = vpop.f32.mrb[0].mxu0
    %1246 = vdwg.mxu0
    %1249 = vrot.lane.b32.xlu0 %v1194, 24
    %v1250 = vpop.permute.xlu0 %1249
    %1251 = vrot.lane.b32.xlu0 %v1242, 24
    %v1252 = vpop.permute.xlu0 %1251
    %vm1255 = vcmask 261312
    %1256 = vst.msk [vmem:[#allocation2] sm:$0xff] %vm1255, %v1250
    %1257 = vst.msk [vmem:[#allocation2 + $0x8] sm:$0xff] %vm1255, %v1252
    %v1258 = vld [vmem:[#allocation2] sm:$0xff]
    %v1259 = vld [vmem:[#allocation2 + $0x8] sm:$0xff]
    %v1260 = vpack.c.bf16 %v1259, %v1258
    %v1261 = vld [vmem:[#allocation14] sm:$0xf]
    %v1262 = vld [vmem:[#allocation14 + $0x4] sm:$0xf]
    %v1263 = vld [vmem:[#allocation14 + $0x8] sm:$0xf]
    %v1264 = vld [vmem:[#allocation14 + $0xc] sm:$0xf]
    %v1265 = vld [vmem:[%s8] sm:$0x1]
    %v1267 = vlaneseq
    %v1268 = vshrl.u32 %v1267, 7
    %v1269 = vsub.s32 0, %v1268
    %v1270 = vrot.slane %v1265, %v1269
    %v1276 = vunpack.c.l.b16 %v1261
    %v1277 = vunpack.c.l.b16 %v1262
    %v1278 = vunpack.c.l.b16 %v1263
    %v1279 = vunpack.c.l.b16 %v1264
    %v1280 = vpack.c.b16 %v1277, %v1276
    %v1281 = vpack.c.b16 %v1279, %v1278
    %v1285 = vsel %vm148, %v1260, 0
    %1287 = vmatprep.subr.bf16.mxu0 0
    %1288 = vmatpush1.bf16.msra.mxu0 %v1280
    %1289 = vmatprep.subr.bf16.mxu0 0
    %1290 = vmatpush1.bf16.msra.mxu0 %v1281
    %1291 = vmatprep.subr.bf16.mxu0 0
    %1292 = vmatpush1.bf16.msra.mxu0 0
    %1293 = vmatprep.subr.bf16.mxu0 0
    %1294 = vmatpush1.bf16.msra.mxu0 0
    %1295 = vmatprep.subr.bf16.mxu0 0
    %1296 = vmatpush1.bf16.msra.mxu0 0
    %1297 = vmatprep.subr.bf16.mxu0 0
    %1298 = vmatpush1.bf16.msra.mxu0 0
    %1299 = vmatprep.subr.bf16.mxu0 0
    %1300 = vmatpush1.bf16.msra.mxu0 0
    %1301 = vmatprep.subr.bf16.mxu0 0
    %1302 = vmatpush1.bf16.msra.mxu0 0
    %1303 = vmatprep.subr.bf16.mxu0 0
    %1304 = vmatpush1.bf16.msra.mxu0 0
    %1305 = vmatprep.subr.bf16.mxu0 0
    %1306 = vmatpush1.bf16.msra.mxu0 0
    %1307 = vmatprep.subr.bf16.mxu0 0
    %1308 = vmatpush1.bf16.msra.mxu0 0
    %1309 = vmatprep.subr.bf16.mxu0 0
    %1310 = vmatpush1.bf16.msra.mxu0 0
    %1311 = vmatprep.subr.bf16.mxu0 0
    %1312 = vmatpush1.bf16.msra.mxu0 0
    %1313 = vmatprep.subr.bf16.mxu0 0
    %1314 = vmatpush1.bf16.msra.mxu0 0
    %1315 = vmatprep.subr.bf16.mxu0 0
    %1316 = vmatpush1.bf16.msra.mxu0 0
    %1317 = vmatprep.subr.bf16.mxu0 0
    %1318 = vmatpush1.bf16.msra.mxu0 0
    %1319 = vmatprep.mubr.bf16.mxu0 0
    %1320 = vmatmul.mubr.bf16.gmra.mrb[0].mxu0 %v1285
    %v1321 = vpop.f32.mrb[0].mxu0
    %v1322 = vadd.f32 %v1270, %v1321
    %v1323 = vpop.f32.mrb[0].mxu0
    %v1324 = vpop.f32.mrb[0].mxu0
    %v1325 = vadd.f32 %v1270, %v1324
    %v1326 = vpop.f32.mrb[0].mxu0
    %1327 = vdwg.mxu0
    %v1331 = vunpack.c.l.s4 1983009808
    %v1332 = vunpack.c.0.s8 %v1331
    %v1333 = vlaneseq
    %v1334 = vshrl.u32 %v1333, 7
    %v1335 = vsub.s32 %v1332, %v1334
    %v1336 = vrot.slane %v1322, %v1335
    %v1338 = vunpack.c.l.s4 1983009808
    %v1339 = vunpack.c.0.s8 %v1338
    %v1340 = vlaneseq
    %v1341 = vshrl.u32 %v1340, 7
    %v1342 = vsub.s32 %v1339, %v1341
    %v1343 = vrot.slane %v1325, %v1342
    %vm1344 = vcmask 1044484
    %v1345 = vsel %vm1344, %v1336, %v1336
    %vm1346 = vcmask 1046534
    %v1347 = vsel %vm1346, %v1336, %v1345
    %v1348 = vrot.slane %v1343, 7
    %vm1349 = vcmask 1041409
    %v1350 = vsel %vm1349, %v1348, %v1347
    %vm1351 = vcmask 1043459
    %v1352 = vsel %vm1351, %v1348, %v1350
    %vm1353 = vcmask 1045509
    %v1354 = vsel %vm1353, %v1348, %v1352
    %vm1355 = vcmask 1047559
    %v1356 = vsel %vm1355, %v1348, %v1354
    %vm1358 = vcmask 254976
    %1359 = vst.msk [vmem:[#allocation15] sm:$0x3] %vm1358, %v1356
    %v1360 = vrot.slane %v1336, 1
    %v1361 = vsel %vm1344, %v1360, %v1360
    %v1362 = vsel %vm1346, %v1360, %v1361
    %v1363 = vsel %vm1349, %v1343, %v1362
    %v1364 = vsel %vm1351, %v1343, %v1363
    %v1365 = vsel %vm1353, %v1343, %v1364
    %v1366 = vsel %vm1355, %v1343, %v1365
    %1367 = vrot.lane.b32.xlu0 %v1366, 32
    %v1368 = vpop.permute.xlu0 %1367
    %vm1370 = vcmask 517376
    %1371 = vst.msk [vmem:[#allocation15] sm:$0x3] %vm1370, %v1368
    %v1372 = vcombine.high %v1336, %v1336
    %v1373 = vcombine.high %v1343, %v1343
    %v1374 = vsel %vm1344, %v1372, %v1372
    %v1375 = vsel %vm1346, %v1372, %v1374
    %v1376 = vrot.slane %v1373, 7
    %v1377 = vsel %vm1349, %v1376, %v1375
    %v1378 = vsel %vm1351, %v1376, %v1377
    %v1379 = vsel %vm1353, %v1376, %v1378
    %v1380 = vsel %vm1355, %v1376, %v1379
    %1381 = vrot.lane.b32.xlu0 %v1380, 64
    %v1382 = vpop.permute.xlu0 %1381
    %vm1384 = vcmask 779776
    %1385 = vst.msk [vmem:[#allocation15] sm:$0x3] %vm1384, %v1382
    %v1386 = vrot.slane %v1372, 1
    %v1387 = vsel %vm1344, %v1386, %v1386
    %v1388 = vsel %vm1346, %v1386, %v1387
    %v1389 = vsel %vm1349, %v1373, %v1388
    %v1390 = vsel %vm1351, %v1373, %v1389
    %v1391 = vsel %vm1353, %v1373, %v1390
    %v1392 = vsel %vm1355, %v1373, %v1391
    %1393 = vrot.lane.b32.xlu0 %v1392, 96
    %v1394 = vpop.permute.xlu0 %1393
    %vm1396 = vcmask 1042176
    %1397 = vst.msk [vmem:[#allocation15] sm:$0x3] %vm1396, %v1394
    %v1398 = vcombine.high %v1322, %v1322
    %v1400 = vunpack.c.l.s4 1983009808
    %v1401 = vunpack.c.0.s8 %v1400
    %v1402 = vlaneseq
    %v1403 = vshrl.u32 %v1402, 7
    %v1404 = vsub.s32 %v1401, %v1403
    %v1405 = vrot.slane %v1398, %v1404
    %v1406 = vcombine.high %v1325, %v1325
    %v1408 = vunpack.c.l.s4 1983009808
    %v1409 = vunpack.c.0.s8 %v1408
    %v1410 = vlaneseq
    %v1411 = vshrl.u32 %v1410, 7
    %v1412 = vsub.s32 %v1409, %v1411
    %v1413 = vrot.slane %v1406, %v1412
    %v1414 = vsel %vm1344, %v1405, %v1405
    %v1415 = vsel %vm1346, %v1405, %v1414
    %v1416 = vrot.slane %v1413, 7
    %v1417 = vsel %vm1349, %v1416, %v1415
    %v1418 = vsel %vm1351, %v1416, %v1417
    %v1419 = vsel %vm1353, %v1416, %v1418
    %v1420 = vsel %vm1355, %v1416, %v1419
    %1422 = vst.msk [vmem:[#allocation15 + $0x2] sm:$0x3] %vm1358, %v1420
    %v1423 = vrot.slane %v1405, 1
    %v1424 = vsel %vm1344, %v1423, %v1423
    %v1425 = vsel %vm1346, %v1423, %v1424
    %v1426 = vsel %vm1349, %v1413, %v1425
    %v1427 = vsel %vm1351, %v1413, %v1426
    %v1428 = vsel %vm1353, %v1413, %v1427
    %v1429 = vsel %vm1355, %v1413, %v1428
    %1430 = vrot.lane.b32.xlu0 %v1429, 32
    %v1431 = vpop.permute.xlu0 %1430
    %1433 = vst.msk [vmem:[#allocation15 + $0x2] sm:$0x3] %vm1370, %v1431
    %v1434 = vcombine.high %v1405, %v1405
    %v1435 = vcombine.high %v1413, %v1413
    %v1436 = vsel %vm1344, %v1434, %v1434
    %v1437 = vsel %vm1346, %v1434, %v1436
    %v1438 = vrot.slane %v1435, 7
    %v1439 = vsel %vm1349, %v1438, %v1437
    %v1440 = vsel %vm1351, %v1438, %v1439
    %v1441 = vsel %vm1353, %v1438, %v1440
    %v1442 = vsel %vm1355, %v1438, %v1441
    %1443 = vrot.lane.b32.xlu0 %v1442, 64
    %v1444 = vpop.permute.xlu0 %1443
    %1446 = vst.msk [vmem:[#allocation15 + $0x2] sm:$0x3] %vm1384, %v1444
    %v1447 = vrot.slane %v1434, 1
    %v1448 = vsel %vm1344, %v1447, %v1447
    %v1449 = vsel %vm1346, %v1447, %v1448
    %v1450 = vsel %vm1349, %v1435, %v1449
    %v1451 = vsel %vm1351, %v1435, %v1450
    %v1452 = vsel %vm1353, %v1435, %v1451
    %v1453 = vsel %vm1355, %v1435, %v1452
    %1454 = vrot.lane.b32.xlu0 %v1453, 96
    %v1455 = vpop.permute.xlu0 %1454
    %1457 = vst.msk [vmem:[#allocation15 + $0x2] sm:$0x3] %vm1396, %v1455
    // Predicated region
    $region66: #{tpu_custom_call.1} parent=1 // pred_check
      _
    $region67: #{tpu_custom_call.1} parent=1 // pred_check_branch
      %1459 = sbr.rel (0) target = $region69
    $region68: #{tpu_custom_call.1} parent=1 // pred_region
      %s1461 = ssub.s32 64, 64
      %1462 = vsyncadd [#allocation5], %s1461
      %s1464 = sshll.u32 [#allocation15], 4
      %s1465 = int_to_ptr.vmem [resolvable:$true] %s1464
      %1467 = dma.vmem_to_hbm [thread:$0]  %s1465, 64, %s9, [#allocation5]
    $region69: #{tpu_custom_call.1} parent=1 // pred_fallthru
      _
    // Predicated region
    $region70: #{tpu_custom_call.1} parent=1 // pred_check
      _
    $region71: #{tpu_custom_call.1} parent=1 // pred_check_branch
      %1469 = sbr.rel (0) target = $region73
    $region72: #{tpu_custom_call.1} parent=1 // pred_region
      %1470 = dma.done [#allocation5], 64
    $region73: #{tpu_custom_call.1} parent=1 // pred_fallthru
      _
    %1471 = vsyncpa [#allocation4], 1
    %1472 = vsyncpa [#allocation7], 1
    %1473 = vsyncpa [#allocation10], 1
    %1474 = vsyncpa [#allocation13], 1
    %1475 = vsyncpa [#allocation5], 1

</llo_original>
